<compile_context>
chip_gen: v7x
topology: tpu7x:2x2x1
jax: 0.10.0
libtpu: 0.0.40
codegen_flags: <defaults>
</compile_context>

<pallas_src>
import math

import jax
import jax.numpy as jnp
from jax.experimental import pallas as pl
from jax.experimental.pallas import tpu as pltpu

# ------------------------- small, module-consistent config -------------------------
B = 2            # batch
L = 8            # event sequence length
BL = B * L       # flattened batch*seq
N_MARKS = 6      # number of marks (PAD = 0 is dropped from the one-hot)
N_MARKS_PAD = 8  # one-hot width padded to 8 (extra mark columns hit zero weight rows)
D_TYPE_EMB = 32
D_MODEL = D_TYPE_EMB     # time_enc == 'sum'  ->  d_time = 0, d_model = d_type_emb
N_HEAD = 2
D_K = 16
D_V = 16
D_INNER = 64
N_LAYERS = 2
DIAG_OFFSET = 1
PAD = 0
LN_EPS = 1e-6


# ------------------------------------ kernel ---------------------------------------
def teedam_kernel(ev_row_ref, ev_col_ref, emb_ref,
                  wqkv_ref, wfc_ref, w1_ref, w2_ref, vecs_ref,
                  out_ref):
    # ---- tiny runtime descriptors (f32) ----
    evr = ev_row_ref[...]                 # [BL, 4]: etype, etime, pos-in-seq, batch-id
    etype = evr[:, 0:1]                   # [BL, 1]
    etime = evr[:, 1:2]                   # [BL, 1]
    pos_r = evr[:, 2:3]                   # [BL, 1]
    bat_r = evr[:, 3:4]                   # [BL, 1]
    evc = ev_col_ref[...]                 # [3, BL]: etype, pos, batch (column form)
    etype_c = evc[0:1, :]                 # [1, BL]
    pos_c = evc[1:2, :]                   # [1, BL]
    bat_c = evc[2:3, :]                   # [1, BL]

    npm = jnp.where(etype != 0.0, 1.0, 0.0)          # [BL, 1] non-pad mask

    # ---- additive attention mask (causal + key-pad + cross-batch), built in-kernel
    masked = jnp.logical_or(
        jnp.logical_or(bat_r != bat_c, pos_c >= pos_r + float(DIAG_OFFSET)),
        etype_c == 0.0)                                # [BL, BL] bool
    bias = jnp.where(masked, -1e9, 0.0)                # [BL, BL] additive mask

    # ---- embedding slab: [0:8] Wemb (padded), [8] bemb, [9] 1/pos_vec, [10] even mask
    emb = emb_ref[...]
    wemb = emb[0:N_MARKS_PAD, :]                       # [8, D]
    bemb = emb[N_MARKS_PAD:N_MARKS_PAD + 1, :]         # [1, D]
    inv_pos = emb[N_MARKS_PAD + 1:N_MARKS_PAD + 2, :]  # [1, D]
    even_f = emb[N_MARKS_PAD + 2:N_MARKS_PAD + 3, :]   # [1, D]

    # one-hot(type)[:,1:] @ Wemb + bemb   (iota-compare one-hot, single matmul)
    marks_f = (jax.lax.broadcasted_iota(jnp.int32, (BL, N_MARKS_PAD), 1) + 1
               ).astype(jnp.float32)
    onehot = jnp.where(etype == marks_f, 1.0, 0.0)                     # [BL, 8]
    x = jnp.dot(onehot, wemb, preferred_element_type=jnp.float32) + bemb

    # sinusoidal temporal encoding ('sum' variant), sin/cos on EUP
    r = etime * inv_pos                                                # [BL, D]
    time_enc = jnp.where(even_f > 0.5, jnp.sin(r), jnp.cos(r)) * npm
    x = x + time_enc

    inv_temp = 1.0 / (float(D_K) ** 0.5)

    def layer_norm(y, gamma, beta):
        # E[x^2] - mu^2 : two independent reductions, gamma folded into the scale
        mu = jnp.mean(y, axis=-1, keepdims=True)
        ms = jnp.mean(y * y, axis=-1, keepdims=True)
        scale = jax.lax.rsqrt(ms - mu * mu + LN_EPS) * gamma
        return (y - mu) * scale + beta

    for l in range(N_LAYERS):            # N_LAYERS = 2: fully unrolled
        vecs = vecs_ref[l]               # [8, 64] packed per-layer bias / LN vectors
        bfc = vecs[0:1, :D_MODEL]
        g1 = vecs[1:2, :D_MODEL]
        be1 = vecs[2:3, :D_MODEL]
        b1 = vecs[3:4, :]                # [1, d_inner]
        b2 = vecs[4:5, :D_MODEL]
        g2 = vecs[5:6, :D_MODEL]
        be2 = vecs[6:7, :D_MODEL]

        # ------------------ multi-head self-attention (post-norm) ------------------
        residual = x
        # single lane-dense QKV projection: [BL,32] @ [32,96]
        qkv = jnp.dot(x, wqkv_ref[l], preferred_element_type=jnp.float32)  # [BL, 96]

        heads = []
        for h in range(N_HEAD):
            q_h = qkv[:, h * D_K:(h + 1) * D_K]
            k_h = qkv[:, N_HEAD * D_K + h * D_K:N_HEAD * D_K + (h + 1) * D_K]
            v_h = qkv[:, 2 * N_HEAD * D_K + h * D_V:2 * N_HEAD * D_K + (h + 1) * D_V]

            logits = jax.lax.dot_general(
                q_h, k_h, (((1,), (1,)), ((), ())),
                preferred_element_type=jnp.float32) * inv_temp + bias     # [BL, BL]
            m = jnp.max(logits, axis=-1, keepdims=True)
            e = jnp.exp(logits - m)
            p = e * pl.reciprocal(jnp.sum(e, axis=-1, keepdims=True), approx=True)
            heads.append(jnp.dot(p, v_h, preferred_element_type=jnp.float32))

        o = jnp.concatenate(heads, axis=-1)                               # [BL, H*D_V]
        attn_out = jnp.dot(o, wfc_ref[l],
                           preferred_element_type=jnp.float32) + bfc      # [BL, D]
        x = layer_norm(attn_out + residual, g1, be1) * npm

        # -------------------- position-wise feed forward (post-norm) ---------------
        residual = x
        h1 = jnp.dot(x, w1_ref[l], preferred_element_type=jnp.float32) + b1
        h1 = jax.nn.gelu(h1, approximate=True)
        h2 = jnp.dot(h1, w2_ref[l], preferred_element_type=jnp.float32) + b2
        x = layer_norm(h2 + residual, g2, be2) * npm

    out_ref[...] = x


# ------------------------------------ wrapper ---------------------------------------
@jax.jit
def teedam_forward(event_type, event_time, params):
    flat_type = event_type.reshape(BL).astype(jnp.float32)
    flat_time = event_time.reshape(BL).astype(jnp.float32)

    # per-position descriptors (pos / batch columns are compile-time constants)
    pos_f = (jnp.arange(BL) % L).astype(jnp.float32)
    bat_f = (jnp.arange(BL) // L).astype(jnp.float32)
    ev_row = jnp.stack([flat_type, flat_time, pos_f, bat_f], axis=-1)      # [BL, 4]
    ev_col = jnp.stack([flat_type, pos_f, bat_f], axis=0)                  # [3, BL]

    # embedding slab: padded Wemb, bemb, 1/pos_vec, even-index mask (constants folded)
    wemb_pad = jnp.zeros((N_MARKS_PAD, D_MODEL), jnp.float32).at[:N_MARKS].set(
        params['wemb'])
    pos_vec = jnp.array(
        [10000.0 ** (2.0 * (i // 2) / D_TYPE_EMB) for i in range(D_TYPE_EMB)],
        dtype=jnp.float32)
    even_mask = (jnp.arange(D_MODEL) % 2 == 0).astype(jnp.float32)
    emb_const = jnp.concatenate(
        [wemb_pad, params['bemb'], (1.0 / pos_vec)[None, :], even_mask[None, :]],
        axis=0)                                                            # [11, D]

    # lane-dense weight packing: QKV as [NL, 32, 96], output proj as [NL, 32, 32]
    wqkv = jnp.concatenate([params['wq'], params['wk'], params['wv']], axis=-1)
    wfc = params['wfc']

    def pad_v(v):  # [NL, 1, d_model] -> [NL, d_inner]
        return jnp.pad(v[:, 0, :], ((0, 0), (0, D_INNER - D_MODEL)))

    vecs = jnp.stack([pad_v(params['bfc']), pad_v(params['g1']), pad_v(params['be1']),
                      params['b1'][:, 0, :],
                      pad_v(params['b2']), pad_v(params['g2']), pad_v(params['be2']),
                      jnp.zeros((N_LAYERS, D_INNER), jnp.float32)],
                     axis=1)                                               # [NL, 8, 64]

    tensors = [ev_row, ev_col, emb_const, wqkv, wfc, params['w1'], params['w2'], vecs]

    out = pl.pallas_call(
        teedam_kernel,
        out_shape=jax.ShapeDtypeStruct((BL, D_MODEL), jnp.float32),
        in_specs=[pl.BlockSpec(memory_space=pltpu.MemorySpace.VMEM)] * len(tensors),
        out_specs=pl.BlockSpec(memory_space=pltpu.MemorySpace.VMEM),
    )(*tensors)
    return out.reshape(B, L, D_MODEL)


# --------------------------- pure-JAX reference (for checking) ----------------------
def teedam_ref(event_type, event_time, p):
    non_pad_mask = (event_type != PAD).astype(jnp.float32)[:, :, None]
    subseq = jnp.triu(jnp.ones((L, L), dtype=jnp.bool_), k=DIAG_OFFSET)[None]
    keypad = (event_type == PAD)[:, None, :]
    attn_mask = subseq | keypad
    onehot = jax.nn.one_hot(event_type, N_MARKS + 1, dtype=jnp.float32)[:, :, 1:]
    pos_vec = jnp.array(
        [10000.0 ** (2.0 * (i // 2) / D_TYPE_EMB) for i in range(D_TYPE_EMB)],
        dtype=jnp.float32)
    r = event_time[:, :, None].astype(jnp.float32) / pos_vec[None, None, :]
    idx = jnp.arange(D_TYPE_EMB)
    time_enc = jnp.where(idx % 2 == 0, jnp.sin(r), jnp.cos(r)) * non_pad_mask

    def layer_norm(x, gamma, beta):
        mu = jnp.mean(x, axis=-1, keepdims=True)
        var = jnp.mean((x - mu) ** 2, axis=-1, keepdims=True)
        return (x - mu) / jnp.sqrt(var + LN_EPS) * gamma + beta

    x = onehot @ p['wemb'] + p['bemb'][0] + time_enc
    temp = float(D_K) ** 0.5
    for l in range(N_LAYERS):
        residual = x
        q = (x @ p['wq'][l]).reshape(B, L, N_HEAD, D_K).transpose(0, 2, 1, 3)
        k = (x @ p['wk'][l]).reshape(B, L, N_HEAD, D_K).transpose(0, 2, 1, 3)
        v = (x @ p['wv'][l]).reshape(B, L, N_HEAD, D_V).transpose(0, 2, 1, 3)
        logits = jnp.einsum('bhqd,bhkd->bhqk', q, k) / temp
        logits = jnp.where(attn_mask[:, None], -1e9, logits)
        attn = jax.nn.softmax(logits, axis=-1)
        o = jnp.einsum('bhqk,bhkd->bhqd', attn, v)
        o = o.transpose(0, 2, 1, 3).reshape(B, L, N_HEAD * D_V)
        o = o @ p['wfc'][l] + p['bfc'][l, 0]
        x = layer_norm(o + residual, p['g1'][l, 0], p['be1'][l, 0]) * non_pad_mask
        residual = x
        h1 = jax.nn.gelu(x @ p['w1'][l] + p['b1'][l, 0], approximate=True)
        h2 = h1 @ p['w2'][l] + p['b2'][l, 0]
        x = layer_norm(h2 + residual, p['g2'][l, 0], p['be2'][l, 0]) * non_pad_mask
    return x


# ------------------------------- parameter initialization ---------------------------
def init_params(key):
    ks = jax.random.split(key, 12)
    s = 0.1
    nrm = lambda k, shape: (jax.random.normal(k, shape, jnp.float32) * s)
    return {
        'wemb': nrm(ks[0], (N_MARKS, D_TYPE_EMB)),
        'bemb': nrm(ks[1], (1, D_TYPE_EMB)),
        'wq':  nrm(ks[2], (N_LAYERS, D_MODEL, N_HEAD * D_K)),
        'wk':  nrm(ks[3], (N_LAYERS, D_MODEL, N_HEAD * D_K)),
        'wv':  nrm(ks[4], (N_LAYERS, D_MODEL, N_HEAD * D_V)),
        'wfc': nrm(ks[5], (N_LAYERS, N_HEAD * D_V, D_MODEL)),
        'bfc': nrm(ks[6], (N_LAYERS, 1, D_MODEL)),
        'g1':  jnp.ones((N_LAYERS, 1, D_MODEL), jnp.float32),
        'be1': jnp.zeros((N_LAYERS, 1, D_MODEL), jnp.float32),
        'w1':  nrm(ks[7], (N_LAYERS, D_MODEL, D_INNER)),
        'b1':  nrm(ks[8], (N_LAYERS, 1, D_INNER)),
        'w2':  nrm(ks[9], (N_LAYERS, D_INNER, D_MODEL)),
        'b2':  nrm(ks[10], (N_LAYERS, 1, D_MODEL)),
        'g2':  jnp.ones((N_LAYERS, 1, D_MODEL), jnp.float32),
        'be2': jnp.zeros((N_LAYERS, 1, D_MODEL), jnp.float32),
    }


# ----------------------------------------- main -------------------------------------
if __name__ == "__main__":
    key = jax.random.PRNGKey(0)
    k1, k2, kp = jax.random.split(key, 3)

    # event marks in [1, N_MARKS], with PAD(=0) at the tail of the second sequence
    event_type = jax.random.randint(k1, (B, L), 1, N_MARKS + 1)
    lengths = jnp.array([L, L - 3])
    pos = jnp.arange(L)[None, :]
    event_type = jnp.where(pos < lengths[:, None], event_type, PAD)

    dt = jax.random.uniform(k2, (B, L), minval=0.1, maxval=1.0)
    event_time = jnp.cumsum(dt, axis=1) * (pos < lengths[:, None]).astype(jnp.float32)

    params = init_params(kp)

    out = teedam_forward(event_type, event_time, params)
    out = jax.block_until_ready(out)

    ref = teedam_ref(event_type, event_time, params)
    assert out.shape == (B, L, D_MODEL), out.shape
    max_err = float(jnp.max(jnp.abs(out - ref)))
    assert jnp.allclose(out, ref, atol=1e-2, rtol=1e-2), f"max abs err {max_err}"

    print("KERNEL_OK")
</pallas_src>

<mosaic_0001>
module attributes {stable_mosaic.version = 11 : i64} {
  func.func @teedam_kernel(%arg0: memref<16x4xf32, #tpu.memory_space<vmem>>, %arg1: memref<3x16xf32, #tpu.memory_space<vmem>>, %arg2: memref<11x32xf32, #tpu.memory_space<vmem>>, %arg3: memref<2x32x96xf32, #tpu.memory_space<vmem>>, %arg4: memref<2x32x32xf32, #tpu.memory_space<vmem>>, %arg5: memref<2x32x64xf32, #tpu.memory_space<vmem>>, %arg6: memref<2x64x32xf32, #tpu.memory_space<vmem>>, %arg7: memref<2x8x64xf32, #tpu.memory_space<vmem>>, %arg8: memref<16x32xf32, #tpu.memory_space<vmem>>) attributes {dimension_semantics = [], scalar_prefetch = 0 : i64, scratch_operands = 0 : i64, tpu.core_type = #tpu.core_type<tc>} {
    %c0 = arith.constant 0 : index
    %c0_0 = arith.constant 0 : index
    %0 = vector.load %arg0[%c0, %c0_0] : memref<16x4xf32, #tpu.memory_space<vmem>>, vector<16x4xf32>
    %1 = vector.extract_strided_slice %0 {offsets = [0, 0], sizes = [16, 1], strides = [1, 1]} : vector<16x4xf32> to vector<16x1xf32>
    %2 = vector.extract_strided_slice %0 {offsets = [0, 1], sizes = [16, 1], strides = [1, 1]} : vector<16x4xf32> to vector<16x1xf32>
    %3 = vector.extract_strided_slice %0 {offsets = [0, 2], sizes = [16, 1], strides = [1, 1]} : vector<16x4xf32> to vector<16x1xf32>
    %4 = vector.extract_strided_slice %0 {offsets = [0, 3], sizes = [16, 1], strides = [1, 1]} : vector<16x4xf32> to vector<16x1xf32>
    %c0_1 = arith.constant 0 : index
    %c0_2 = arith.constant 0 : index
    %5 = vector.load %arg1[%c0_1, %c0_2] : memref<3x16xf32, #tpu.memory_space<vmem>>, vector<3x16xf32>
    %6 = vector.extract_strided_slice %5 {offsets = [0, 0], sizes = [1, 16], strides = [1, 1]} : vector<3x16xf32> to vector<1x16xf32>
    %7 = vector.extract_strided_slice %5 {offsets = [1, 0], sizes = [1, 16], strides = [1, 1]} : vector<3x16xf32> to vector<1x16xf32>
    %8 = vector.extract_strided_slice %5 {offsets = [2, 0], sizes = [1, 16], strides = [1, 1]} : vector<3x16xf32> to vector<1x16xf32>
    %cst = arith.constant 0.000000e+00 : f32
    %9 = vector.broadcast %cst : f32 to vector<16x1xf32>
    %10 = arith.cmpf one, %1, %9 : vector<16x1xf32>
    %cst_3 = arith.constant 1.000000e+00 : f32
    %cst_4 = arith.constant 0.000000e+00 : f32
    %11 = vector.broadcast %cst_3 : f32 to vector<16x1xf32>
    %12 = vector.broadcast %cst_4 : f32 to vector<16x1xf32>
    %13 = arith.select %10, %11, %12 : vector<16x1xi1>, vector<16x1xf32>
    %14 = vector.broadcast %4 : vector<16x1xf32> to vector<16x16xf32>
    %15 = vector.broadcast %8 : vector<1x16xf32> to vector<16x16xf32>
    %16 = arith.cmpf one, %14, %15 : vector<16x16xf32>
    %cst_5 = arith.constant 1.000000e+00 : f32
    %17 = vector.broadcast %cst_5 : f32 to vector<16x1xf32>
    %18 = arith.addf %3, %17 : vector<16x1xf32>
    %19 = vector.broadcast %7 : vector<1x16xf32> to vector<16x16xf32>
    %20 = vector.broadcast %18 : vector<16x1xf32> to vector<16x16xf32>
    %21 = arith.cmpf oge, %19, %20 : vector<16x16xf32>
    %22 = arith.ori %16, %21 : vector<16x16xi1>
    %cst_6 = arith.constant 0.000000e+00 : f32
    %23 = vector.broadcast %cst_6 : f32 to vector<1x16xf32>
    %24 = arith.cmpf oeq, %6, %23 : vector<1x16xf32>
    %25 = vector.broadcast %24 : vector<1x16xi1> to vector<16x16xi1>
    %26 = arith.ori %22, %25 : vector<16x16xi1>
    %cst_7 = arith.constant -1.000000e+09 : f32
    %cst_8 = arith.constant 0.000000e+00 : f32
    %27 = vector.broadcast %cst_7 : f32 to vector<16x16xf32>
    %28 = vector.broadcast %cst_8 : f32 to vector<16x16xf32>
    %29 = arith.select %26, %27, %28 : vector<16x16xi1>, vector<16x16xf32>
    %c0_9 = arith.constant 0 : index
    %c0_10 = arith.constant 0 : index
    %30 = vector.load %arg2[%c0_9, %c0_10] : memref<11x32xf32, #tpu.memory_space<vmem>>, vector<11x32xf32>
    %31 = vector.extract_strided_slice %30 {offsets = [0, 0], sizes = [8, 32], strides = [1, 1]} : vector<11x32xf32> to vector<8x32xf32>
    %32 = vector.extract_strided_slice %30 {offsets = [8, 0], sizes = [1, 32], strides = [1, 1]} : vector<11x32xf32> to vector<1x32xf32>
    %33 = vector.extract_strided_slice %30 {offsets = [9, 0], sizes = [1, 32], strides = [1, 1]} : vector<11x32xf32> to vector<1x32xf32>
    %34 = vector.extract_strided_slice %30 {offsets = [10, 0], sizes = [1, 32], strides = [1, 1]} : vector<11x32xf32> to vector<1x32xf32>
    %35 = tpu.iota {dimensions = array<i32: 1>} : vector<16x8xi32>
    %c1_i32 = arith.constant 1 : i32
    %36 = vector.broadcast %c1_i32 : i32 to vector<16x8xi32>
    %37 = arith.addi %35, %36 : vector<16x8xi32>
    %38 = arith.sitofp %37 : vector<16x8xi32> to vector<16x8xf32>
    %39 = vector.broadcast %1 : vector<16x1xf32> to vector<16x8xf32>
    %40 = arith.cmpf oeq, %39, %38 : vector<16x8xf32>
    %cst_11 = arith.constant 1.000000e+00 : f32
    %cst_12 = arith.constant 0.000000e+00 : f32
    %41 = vector.broadcast %cst_11 : f32 to vector<16x8xf32>
    %42 = vector.broadcast %cst_12 : f32 to vector<16x8xf32>
    %43 = arith.select %40, %41, %42 : vector<16x8xi1>, vector<16x8xf32>
    %cst_13 = arith.constant dense<0.000000e+00> : vector<16x32xf32>
    %44 = tpu.matmul %43, %31, %cst_13 {dimension_numbers = #tpu.dot_dimension_numbers<[1], [0], [0], [1], [0, 0, 1, 1], [], []>} : vector<16x8xf32>, vector<8x32xf32>, vector<16x32xf32> -> vector<16x32xf32>
    %45 = vector.broadcast %32 : vector<1x32xf32> to vector<16x32xf32>
    %46 = arith.addf %44, %45 : vector<16x32xf32>
    %47 = vector.broadcast %2 : vector<16x1xf32> to vector<16x32xf32>
    %48 = vector.broadcast %33 : vector<1x32xf32> to vector<16x32xf32>
    %49 = arith.mulf %47, %48 : vector<16x32xf32>
    %cst_14 = arith.constant 5.000000e-01 : f32
    %50 = vector.broadcast %cst_14 : f32 to vector<1x32xf32>
    %51 = arith.cmpf ogt, %34, %50 : vector<1x32xf32>
    %52 = math.sin %49 : vector<16x32xf32>
    %53 = math.cos %49 : vector<16x32xf32>
    %54 = vector.shape_cast %51 : vector<1x32xi1> to vector<1x32xi1>
    %55 = vector.broadcast %54 : vector<1x32xi1> to vector<16x32xi1>
    %56 = arith.select %55, %52, %53 : vector<16x32xi1>, vector<16x32xf32>
    %57 = vector.broadcast %13 : vector<16x1xf32> to vector<16x32xf32>
    %58 = arith.mulf %56, %57 : vector<16x32xf32>
    %59 = arith.addf %46, %58 : vector<16x32xf32>
    %c0_15 = arith.constant 0 : index
    %c0_16 = arith.constant 0 : index
    %c0_17 = arith.constant 0 : index
    %60 = vector.load %arg7[%c0_15, %c0_16, %c0_17] : memref<2x8x64xf32, #tpu.memory_space<vmem>>, vector<1x8x64xf32>
    %61 = vector.shape_cast %60 : vector<1x8x64xf32> to vector<8x64xf32>
    %62 = vector.extract_strided_slice %61 {offsets = [0, 0], sizes = [1, 32], strides = [1, 1]} : vector<8x64xf32> to vector<1x32xf32>
    %63 = vector.extract_strided_slice %61 {offsets = [1, 0], sizes = [1, 32], strides = [1, 1]} : vector<8x64xf32> to vector<1x32xf32>
    %64 = vector.extract_strided_slice %61 {offsets = [2, 0], sizes = [1, 32], strides = [1, 1]} : vector<8x64xf32> to vector<1x32xf32>
    %65 = vector.extract_strided_slice %61 {offsets = [3, 0], sizes = [1, 64], strides = [1, 1]} : vector<8x64xf32> to vector<1x64xf32>
    %66 = vector.extract_strided_slice %61 {offsets = [4, 0], sizes = [1, 32], strides = [1, 1]} : vector<8x64xf32> to vector<1x32xf32>
    %67 = vector.extract_strided_slice %61 {offsets = [5, 0], sizes = [1, 32], strides = [1, 1]} : vector<8x64xf32> to vector<1x32xf32>
    %68 = vector.extract_strided_slice %61 {offsets = [6, 0], sizes = [1, 32], strides = [1, 1]} : vector<8x64xf32> to vector<1x32xf32>
    %c0_18 = arith.constant 0 : index
    %c0_19 = arith.constant 0 : index
    %c0_20 = arith.constant 0 : index
    %69 = vector.load %arg3[%c0_18, %c0_19, %c0_20] : memref<2x32x96xf32, #tpu.memory_space<vmem>>, vector<1x32x96xf32>
    %70 = vector.shape_cast %69 : vector<1x32x96xf32> to vector<32x96xf32>
    %cst_21 = arith.constant dense<0.000000e+00> : vector<16x96xf32>
    %71 = tpu.matmul %59, %70, %cst_21 {dimension_numbers = #tpu.dot_dimension_numbers<[1], [0], [0], [1], [0, 0, 1, 1], [], []>} : vector<16x32xf32>, vector<32x96xf32>, vector<16x96xf32> -> vector<16x96xf32>
    %72 = vector.extract_strided_slice %71 {offsets = [0, 0], sizes = [16, 16], strides = [1, 1]} : vector<16x96xf32> to vector<16x16xf32>
    %73 = vector.extract_strided_slice %71 {offsets = [0, 32], sizes = [16, 16], strides = [1, 1]} : vector<16x96xf32> to vector<16x16xf32>
    %74 = vector.extract_strided_slice %71 {offsets = [0, 64], sizes = [16, 16], strides = [1, 1]} : vector<16x96xf32> to vector<16x16xf32>
    %cst_22 = arith.constant dense<0.000000e+00> : vector<16x16xf32>
    %75 = tpu.matmul %72, %73, %cst_22 {dimension_numbers = #tpu.dot_dimension_numbers<[1], [1], [0], [0], [0, 0, 1, 0], [], []>} : vector<16x16xf32>, vector<16x16xf32>, vector<16x16xf32> -> vector<16x16xf32>
    %cst_23 = arith.constant 2.500000e-01 : f32
    %76 = vector.broadcast %cst_23 : f32 to vector<16x16xf32>
    %77 = arith.mulf %75, %76 : vector<16x16xf32>
    %78 = arith.addf %77, %29 : vector<16x16xf32>
    %cst_24 = arith.constant dense<0xFF800000> : vector<16xf32>
    %79 = vector.multi_reduction <maximumf>, %78, %cst_24 [1] : vector<16x16xf32> to vector<16xf32>
    %80 = vector.shape_cast %79 : vector<16xf32> to vector<16x1xf32>
    %81 = vector.broadcast %80 : vector<16x1xf32> to vector<16x16xf32>
    %82 = arith.subf %78, %81 : vector<16x16xf32>
    %83 = math.exp %82 : vector<16x16xf32>
    %cst_25 = arith.constant dense<0.000000e+00> : vector<16xf32>
    %84 = vector.multi_reduction <add>, %83, %cst_25 [1] : vector<16x16xf32> to vector<16xf32>
    %85 = vector.shape_cast %84 : vector<16xf32> to vector<16x1xf32>
    %86 = tpu.reciprocal %85 {approx = true} : vector<16x1xf32> -> vector<16x1xf32>
    %87 = vector.broadcast %86 : vector<16x1xf32> to vector<16x16xf32>
    %88 = arith.mulf %83, %87 : vector<16x16xf32>
    %cst_26 = arith.constant dense<0.000000e+00> : vector<16x16xf32>
    %89 = tpu.matmul %88, %74, %cst_26 {dimension_numbers = #tpu.dot_dimension_numbers<[1], [0], [0], [1], [0, 0, 1, 1], [], []>} : vector<16x16xf32>, vector<16x16xf32>, vector<16x16xf32> -> vector<16x16xf32>
    %90 = vector.extract_strided_slice %71 {offsets = [0, 16], sizes = [16, 16], strides = [1, 1]} : vector<16x96xf32> to vector<16x16xf32>
    %91 = vector.extract_strided_slice %71 {offsets = [0, 48], sizes = [16, 16], strides = [1, 1]} : vector<16x96xf32> to vector<16x16xf32>
    %92 = vector.extract_strided_slice %71 {offsets = [0, 80], sizes = [16, 16], strides = [1, 1]} : vector<16x96xf32> to vector<16x16xf32>
    %cst_27 = arith.constant dense<0.000000e+00> : vector<16x16xf32>
    %93 = tpu.matmul %90, %91, %cst_27 {dimension_numbers = #tpu.dot_dimension_numbers<[1], [1], [0], [0], [0, 0, 1, 0], [], []>} : vector<16x16xf32>, vector<16x16xf32>, vector<16x16xf32> -> vector<16x16xf32>
    %cst_28 = arith.constant 2.500000e-01 : f32
    %94 = vector.broadcast %cst_28 : f32 to vector<16x16xf32>
    %95 = arith.mulf %93, %94 : vector<16x16xf32>
    %96 = arith.addf %95, %29 : vector<16x16xf32>
    %cst_29 = arith.constant dense<0xFF800000> : vector<16xf32>
    %97 = vector.multi_reduction <maximumf>, %96, %cst_29 [1] : vector<16x16xf32> to vector<16xf32>
    %98 = vector.shape_cast %97 : vector<16xf32> to vector<16x1xf32>
    %99 = vector.broadcast %98 : vector<16x1xf32> to vector<16x16xf32>
    %100 = arith.subf %96, %99 : vector<16x16xf32>
    %101 = math.exp %100 : vector<16x16xf32>
    %cst_30 = arith.constant dense<0.000000e+00> : vector<16xf32>
    %102 = vector.multi_reduction <add>, %101, %cst_30 [1] : vector<16x16xf32> to vector<16xf32>
    %103 = vector.shape_cast %102 : vector<16xf32> to vector<16x1xf32>
    %104 = tpu.reciprocal %103 {approx = true} : vector<16x1xf32> -> vector<16x1xf32>
    %105 = vector.broadcast %104 : vector<16x1xf32> to vector<16x16xf32>
    %106 = arith.mulf %101, %105 : vector<16x16xf32>
    %cst_31 = arith.constant dense<0.000000e+00> : vector<16x16xf32>
    %107 = tpu.matmul %106, %92, %cst_31 {dimension_numbers = #tpu.dot_dimension_numbers<[1], [0], [0], [1], [0, 0, 1, 1], [], []>} : vector<16x16xf32>, vector<16x16xf32>, vector<16x16xf32> -> vector<16x16xf32>
    %108 = tpu.concatenate %89, %107 in 1 : vector<16x16xf32>, vector<16x16xf32> -> vector<16x32xf32>
    %c0_32 = arith.constant 0 : index
    %c0_33 = arith.constant 0 : index
    %c0_34 = arith.constant 0 : index
    %109 = vector.load %arg4[%c0_32, %c0_33, %c0_34] : memref<2x32x32xf32, #tpu.memory_space<vmem>>, vector<1x32x32xf32>
    %110 = vector.shape_cast %109 : vector<1x32x32xf32> to vector<32x32xf32>
    %cst_35 = arith.constant dense<0.000000e+00> : vector<16x32xf32>
    %111 = tpu.matmul %108, %110, %cst_35 {dimension_numbers = #tpu.dot_dimension_numbers<[1], [0], [0], [1], [0, 0, 1, 1], [], []>} : vector<16x32xf32>, vector<32x32xf32>, vector<16x32xf32> -> vector<16x32xf32>
    %112 = vector.broadcast %62 : vector<1x32xf32> to vector<16x32xf32>
    %113 = arith.addf %111, %112 : vector<16x32xf32>
    %114 = arith.addf %113, %59 : vector<16x32xf32>
    %cst_36 = arith.constant dense<0.000000e+00> : vector<16xf32>
    %115 = vector.multi_reduction <add>, %114, %cst_36 [1] : vector<16x32xf32> to vector<16xf32>
    %116 = vector.shape_cast %115 : vector<16xf32> to vector<16x1xf32>
    %cst_37 = arith.constant 3.200000e+01 : f32
    %117 = vector.broadcast %cst_37 : f32 to vector<16x1xf32>
    %118 = arith.divf %116, %117 : vector<16x1xf32>
    %119 = arith.mulf %114, %114 : vector<16x32xf32>
    %cst_38 = arith.constant dense<0.000000e+00> : vector<16xf32>
    %120 = vector.multi_reduction <add>, %119, %cst_38 [1] : vector<16x32xf32> to vector<16xf32>
    %121 = vector.shape_cast %120 : vector<16xf32> to vector<16x1xf32>
    %cst_39 = arith.constant 3.200000e+01 : f32
    %122 = vector.broadcast %cst_39 : f32 to vector<16x1xf32>
    %123 = arith.divf %121, %122 : vector<16x1xf32>
    %124 = arith.mulf %118, %118 : vector<16x1xf32>
    %125 = arith.subf %123, %124 : vector<16x1xf32>
    %cst_40 = arith.constant 9.99999997E-7 : f32
    %126 = vector.broadcast %cst_40 : f32 to vector<16x1xf32>
    %127 = arith.addf %125, %126 : vector<16x1xf32>
    %128 = math.rsqrt %127 : vector<16x1xf32>
    %129 = vector.broadcast %128 : vector<16x1xf32> to vector<16x32xf32>
    %130 = vector.broadcast %63 : vector<1x32xf32> to vector<16x32xf32>
    %131 = arith.mulf %129, %130 : vector<16x32xf32>
    %132 = vector.broadcast %118 : vector<16x1xf32> to vector<16x32xf32>
    %133 = arith.subf %114, %132 : vector<16x32xf32>
    %134 = arith.mulf %133, %131 : vector<16x32xf32>
    %135 = vector.broadcast %64 : vector<1x32xf32> to vector<16x32xf32>
    %136 = arith.addf %134, %135 : vector<16x32xf32>
    %137 = vector.broadcast %13 : vector<16x1xf32> to vector<16x32xf32>
    %138 = arith.mulf %136, %137 : vector<16x32xf32>
    %c0_41 = arith.constant 0 : index
    %c0_42 = arith.constant 0 : index
    %c0_43 = arith.constant 0 : index
    %139 = vector.load %arg5[%c0_41, %c0_42, %c0_43] : memref<2x32x64xf32, #tpu.memory_space<vmem>>, vector<1x32x64xf32>
    %140 = vector.shape_cast %139 : vector<1x32x64xf32> to vector<32x64xf32>
    %cst_44 = arith.constant dense<0.000000e+00> : vector<16x64xf32>
    %141 = tpu.matmul %138, %140, %cst_44 {dimension_numbers = #tpu.dot_dimension_numbers<[1], [0], [0], [1], [0, 0, 1, 1], [], []>} : vector<16x32xf32>, vector<32x64xf32>, vector<16x64xf32> -> vector<16x64xf32>
    %142 = vector.broadcast %65 : vector<1x64xf32> to vector<16x64xf32>
    %143 = arith.addf %141, %142 : vector<16x64xf32>
    %144 = arith.mulf %143, %143 : vector<16x64xf32>
    %145 = arith.mulf %143, %144 : vector<16x64xf32>
    %cst_45 = arith.constant 4.471500e-02 : f32
    %146 = vector.broadcast %cst_45 : f32 to vector<16x64xf32>
    %147 = arith.mulf %146, %145 : vector<16x64xf32>
    %148 = arith.addf %143, %147 : vector<16x64xf32>
    %cst_46 = arith.constant 0.797884583 : f32
    %149 = vector.broadcast %cst_46 : f32 to vector<16x64xf32>
    %150 = arith.mulf %149, %148 : vector<16x64xf32>
    %151 = math.tanh %150 : vector<16x64xf32>
    %cst_47 = arith.constant 1.000000e+00 : f32
    %152 = vector.broadcast %cst_47 : f32 to vector<16x64xf32>
    %153 = arith.addf %152, %151 : vector<16x64xf32>
    %cst_48 = arith.constant 5.000000e-01 : f32
    %154 = vector.broadcast %cst_48 : f32 to vector<16x64xf32>
    %155 = arith.mulf %154, %153 : vector<16x64xf32>
    %156 = arith.mulf %143, %155 : vector<16x64xf32>
    %c0_49 = arith.constant 0 : index
    %c0_50 = arith.constant 0 : index
    %c0_51 = arith.constant 0 : index
    %157 = vector.load %arg6[%c0_49, %c0_50, %c0_51] : memref<2x64x32xf32, #tpu.memory_space<vmem>>, vector<1x64x32xf32>
    %158 = vector.shape_cast %157 : vector<1x64x32xf32> to vector<64x32xf32>
    %cst_52 = arith.constant dense<0.000000e+00> : vector<16x32xf32>
    %159 = tpu.matmul %156, %158, %cst_52 {dimension_numbers = #tpu.dot_dimension_numbers<[1], [0], [0], [1], [0, 0, 1, 1], [], []>} : vector<16x64xf32>, vector<64x32xf32>, vector<16x32xf32> -> vector<16x32xf32>
    %160 = vector.broadcast %66 : vector<1x32xf32> to vector<16x32xf32>
    %161 = arith.addf %159, %160 : vector<16x32xf32>
    %162 = arith.addf %161, %138 : vector<16x32xf32>
    %cst_53 = arith.constant dense<0.000000e+00> : vector<16xf32>
    %163 = vector.multi_reduction <add>, %162, %cst_53 [1] : vector<16x32xf32> to vector<16xf32>
    %164 = vector.shape_cast %163 : vector<16xf32> to vector<16x1xf32>
    %cst_54 = arith.constant 3.200000e+01 : f32
    %165 = vector.broadcast %cst_54 : f32 to vector<16x1xf32>
    %166 = arith.divf %164, %165 : vector<16x1xf32>
    %167 = arith.mulf %162, %162 : vector<16x32xf32>
    %cst_55 = arith.constant dense<0.000000e+00> : vector<16xf32>
    %168 = vector.multi_reduction <add>, %167, %cst_55 [1] : vector<16x32xf32> to vector<16xf32>
    %169 = vector.shape_cast %168 : vector<16xf32> to vector<16x1xf32>
    %cst_56 = arith.constant 3.200000e+01 : f32
    %170 = vector.broadcast %cst_56 : f32 to vector<16x1xf32>
    %171 = arith.divf %169, %170 : vector<16x1xf32>
    %172 = arith.mulf %166, %166 : vector<16x1xf32>
    %173 = arith.subf %171, %172 : vector<16x1xf32>
    %cst_57 = arith.constant 9.99999997E-7 : f32
    %174 = vector.broadcast %cst_57 : f32 to vector<16x1xf32>
    %175 = arith.addf %173, %174 : vector<16x1xf32>
    %176 = math.rsqrt %175 : vector<16x1xf32>
    %177 = vector.broadcast %176 : vector<16x1xf32> to vector<16x32xf32>
    %178 = vector.broadcast %67 : vector<1x32xf32> to vector<16x32xf32>
    %179 = arith.mulf %177, %178 : vector<16x32xf32>
    %180 = vector.broadcast %166 : vector<16x1xf32> to vector<16x32xf32>
    %181 = arith.subf %162, %180 : vector<16x32xf32>
    %182 = arith.mulf %181, %179 : vector<16x32xf32>
    %183 = vector.broadcast %68 : vector<1x32xf32> to vector<16x32xf32>
    %184 = arith.addf %182, %183 : vector<16x32xf32>
    %185 = vector.broadcast %13 : vector<16x1xf32> to vector<16x32xf32>
    %186 = arith.mulf %184, %185 : vector<16x32xf32>
    %c1 = arith.constant 1 : index
    %c0_58 = arith.constant 0 : index
    %c0_59 = arith.constant 0 : index
    %187 = vector.load %arg7[%c1, %c0_58, %c0_59] : memref<2x8x64xf32, #tpu.memory_space<vmem>>, vector<1x8x64xf32>
    %188 = vector.shape_cast %187 : vector<1x8x64xf32> to vector<8x64xf32>
    %189 = vector.extract_strided_slice %188 {offsets = [0, 0], sizes = [1, 32], strides = [1, 1]} : vector<8x64xf32> to vector<1x32xf32>
    %190 = vector.extract_strided_slice %188 {offsets = [1, 0], sizes = [1, 32], strides = [1, 1]} : vector<8x64xf32> to vector<1x32xf32>
    %191 = vector.extract_strided_slice %188 {offsets = [2, 0], sizes = [1, 32], strides = [1, 1]} : vector<8x64xf32> to vector<1x32xf32>
    %192 = vector.extract_strided_slice %188 {offsets = [3, 0], sizes = [1, 64], strides = [1, 1]} : vector<8x64xf32> to vector<1x64xf32>
    %193 = vector.extract_strided_slice %188 {offsets = [4, 0], sizes = [1, 32], strides = [1, 1]} : vector<8x64xf32> to vector<1x32xf32>
    %194 = vector.extract_strided_slice %188 {offsets = [5, 0], sizes = [1, 32], strides = [1, 1]} : vector<8x64xf32> to vector<1x32xf32>
    %195 = vector.extract_strided_slice %188 {offsets = [6, 0], sizes = [1, 32], strides = [1, 1]} : vector<8x64xf32> to vector<1x32xf32>
    %c1_60 = arith.constant 1 : index
    %c0_61 = arith.constant 0 : index
    %c0_62 = arith.constant 0 : index
    %196 = vector.load %arg3[%c1_60, %c0_61, %c0_62] : memref<2x32x96xf32, #tpu.memory_space<vmem>>, vector<1x32x96xf32>
    %197 = vector.shape_cast %196 : vector<1x32x96xf32> to vector<32x96xf32>
    %cst_63 = arith.constant dense<0.000000e+00> : vector<16x96xf32>
    %198 = tpu.matmul %186, %197, %cst_63 {dimension_numbers = #tpu.dot_dimension_numbers<[1], [0], [0], [1], [0, 0, 1, 1], [], []>} : vector<16x32xf32>, vector<32x96xf32>, vector<16x96xf32> -> vector<16x96xf32>
    %199 = vector.extract_strided_slice %198 {offsets = [0, 0], sizes = [16, 16], strides = [1, 1]} : vector<16x96xf32> to vector<16x16xf32>
    %200 = vector.extract_strided_slice %198 {offsets = [0, 32], sizes = [16, 16], strides = [1, 1]} : vector<16x96xf32> to vector<16x16xf32>
    %201 = vector.extract_strided_slice %198 {offsets = [0, 64], sizes = [16, 16], strides = [1, 1]} : vector<16x96xf32> to vector<16x16xf32>
    %cst_64 = arith.constant dense<0.000000e+00> : vector<16x16xf32>
    %202 = tpu.matmul %199, %200, %cst_64 {dimension_numbers = #tpu.dot_dimension_numbers<[1], [1], [0], [0], [0, 0, 1, 0], [], []>} : vector<16x16xf32>, vector<16x16xf32>, vector<16x16xf32> -> vector<16x16xf32>
    %cst_65 = arith.constant 2.500000e-01 : f32
    %203 = vector.broadcast %cst_65 : f32 to vector<16x16xf32>
    %204 = arith.mulf %202, %203 : vector<16x16xf32>
    %205 = arith.addf %204, %29 : vector<16x16xf32>
    %cst_66 = arith.constant dense<0xFF800000> : vector<16xf32>
    %206 = vector.multi_reduction <maximumf>, %205, %cst_66 [1] : vector<16x16xf32> to vector<16xf32>
    %207 = vector.shape_cast %206 : vector<16xf32> to vector<16x1xf32>
    %208 = vector.broadcast %207 : vector<16x1xf32> to vector<16x16xf32>
    %209 = arith.subf %205, %208 : vector<16x16xf32>
    %210 = math.exp %209 : vector<16x16xf32>
    %cst_67 = arith.constant dense<0.000000e+00> : vector<16xf32>
    %211 = vector.multi_reduction <add>, %210, %cst_67 [1] : vector<16x16xf32> to vector<16xf32>
    %212 = vector.shape_cast %211 : vector<16xf32> to vector<16x1xf32>
    %213 = tpu.reciprocal %212 {approx = true} : vector<16x1xf32> -> vector<16x1xf32>
    %214 = vector.broadcast %213 : vector<16x1xf32> to vector<16x16xf32>
    %215 = arith.mulf %210, %214 : vector<16x16xf32>
    %cst_68 = arith.constant dense<0.000000e+00> : vector<16x16xf32>
    %216 = tpu.matmul %215, %201, %cst_68 {dimension_numbers = #tpu.dot_dimension_numbers<[1], [0], [0], [1], [0, 0, 1, 1], [], []>} : vector<16x16xf32>, vector<16x16xf32>, vector<16x16xf32> -> vector<16x16xf32>
    %217 = vector.extract_strided_slice %198 {offsets = [0, 16], sizes = [16, 16], strides = [1, 1]} : vector<16x96xf32> to vector<16x16xf32>
    %218 = vector.extract_strided_slice %198 {offsets = [0, 48], sizes = [16, 16], strides = [1, 1]} : vector<16x96xf32> to vector<16x16xf32>
    %219 = vector.extract_strided_slice %198 {offsets = [0, 80], sizes = [16, 16], strides = [1, 1]} : vector<16x96xf32> to vector<16x16xf32>
    %cst_69 = arith.constant dense<0.000000e+00> : vector<16x16xf32>
    %220 = tpu.matmul %217, %218, %cst_69 {dimension_numbers = #tpu.dot_dimension_numbers<[1], [1], [0], [0], [0, 0, 1, 0], [], []>} : vector<16x16xf32>, vector<16x16xf32>, vector<16x16xf32> -> vector<16x16xf32>
    %cst_70 = arith.constant 2.500000e-01 : f32
    %221 = vector.broadcast %cst_70 : f32 to vector<16x16xf32>
    %222 = arith.mulf %220, %221 : vector<16x16xf32>
    %223 = arith.addf %222, %29 : vector<16x16xf32>
    %cst_71 = arith.constant dense<0xFF800000> : vector<16xf32>
    %224 = vector.multi_reduction <maximumf>, %223, %cst_71 [1] : vector<16x16xf32> to vector<16xf32>
    %225 = vector.shape_cast %224 : vector<16xf32> to vector<16x1xf32>
    %226 = vector.broadcast %225 : vector<16x1xf32> to vector<16x16xf32>
    %227 = arith.subf %223, %226 : vector<16x16xf32>
    %228 = math.exp %227 : vector<16x16xf32>
    %cst_72 = arith.constant dense<0.000000e+00> : vector<16xf32>
    %229 = vector.multi_reduction <add>, %228, %cst_72 [1] : vector<16x16xf32> to vector<16xf32>
    %230 = vector.shape_cast %229 : vector<16xf32> to vector<16x1xf32>
    %231 = tpu.reciprocal %230 {approx = true} : vector<16x1xf32> -> vector<16x1xf32>
    %232 = vector.broadcast %231 : vector<16x1xf32> to vector<16x16xf32>
    %233 = arith.mulf %228, %232 : vector<16x16xf32>
    %cst_73 = arith.constant dense<0.000000e+00> : vector<16x16xf32>
    %234 = tpu.matmul %233, %219, %cst_73 {dimension_numbers = #tpu.dot_dimension_numbers<[1], [0], [0], [1], [0, 0, 1, 1], [], []>} : vector<16x16xf32>, vector<16x16xf32>, vector<16x16xf32> -> vector<16x16xf32>
    %235 = tpu.concatenate %216, %234 in 1 : vector<16x16xf32>, vector<16x16xf32> -> vector<16x32xf32>
    %c1_74 = arith.constant 1 : index
    %c0_75 = arith.constant 0 : index
    %c0_76 = arith.constant 0 : index
    %236 = vector.load %arg4[%c1_74, %c0_75, %c0_76] : memref<2x32x32xf32, #tpu.memory_space<vmem>>, vector<1x32x32xf32>
    %237 = vector.shape_cast %236 : vector<1x32x32xf32> to vector<32x32xf32>
    %cst_77 = arith.constant dense<0.000000e+00> : vector<16x32xf32>
    %238 = tpu.matmul %235, %237, %cst_77 {dimension_numbers = #tpu.dot_dimension_numbers<[1], [0], [0], [1], [0, 0, 1, 1], [], []>} : vector<16x32xf32>, vector<32x32xf32>, vector<16x32xf32> -> vector<16x32xf32>
    %239 = vector.broadcast %189 : vector<1x32xf32> to vector<16x32xf32>
    %240 = arith.addf %238, %239 : vector<16x32xf32>
    %241 = arith.addf %240, %186 : vector<16x32xf32>
    %cst_78 = arith.constant dense<0.000000e+00> : vector<16xf32>
    %242 = vector.multi_reduction <add>, %241, %cst_78 [1] : vector<16x32xf32> to vector<16xf32>
    %243 = vector.shape_cast %242 : vector<16xf32> to vector<16x1xf32>
    %cst_79 = arith.constant 3.200000e+01 : f32
    %244 = vector.broadcast %cst_79 : f32 to vector<16x1xf32>
    %245 = arith.divf %243, %244 : vector<16x1xf32>
    %246 = arith.mulf %241, %241 : vector<16x32xf32>
    %cst_80 = arith.constant dense<0.000000e+00> : vector<16xf32>
    %247 = vector.multi_reduction <add>, %246, %cst_80 [1] : vector<16x32xf32> to vector<16xf32>
    %248 = vector.shape_cast %247 : vector<16xf32> to vector<16x1xf32>
    %cst_81 = arith.constant 3.200000e+01 : f32
    %249 = vector.broadcast %cst_81 : f32 to vector<16x1xf32>
    %250 = arith.divf %248, %249 : vector<16x1xf32>
    %251 = arith.mulf %245, %245 : vector<16x1xf32>
    %252 = arith.subf %250, %251 : vector<16x1xf32>
    %cst_82 = arith.constant 9.99999997E-7 : f32
    %253 = vector.broadcast %cst_82 : f32 to vector<16x1xf32>
    %254 = arith.addf %252, %253 : vector<16x1xf32>
    %255 = math.rsqrt %254 : vector<16x1xf32>
    %256 = vector.broadcast %255 : vector<16x1xf32> to vector<16x32xf32>
    %257 = vector.broadcast %190 : vector<1x32xf32> to vector<16x32xf32>
    %258 = arith.mulf %256, %257 : vector<16x32xf32>
    %259 = vector.broadcast %245 : vector<16x1xf32> to vector<16x32xf32>
    %260 = arith.subf %241, %259 : vector<16x32xf32>
    %261 = arith.mulf %260, %258 : vector<16x32xf32>
    %262 = vector.broadcast %191 : vector<1x32xf32> to vector<16x32xf32>
    %263 = arith.addf %261, %262 : vector<16x32xf32>
    %264 = vector.broadcast %13 : vector<16x1xf32> to vector<16x32xf32>
    %265 = arith.mulf %263, %264 : vector<16x32xf32>
    %c1_83 = arith.constant 1 : index
    %c0_84 = arith.constant 0 : index
    %c0_85 = arith.constant 0 : index
    %266 = vector.load %arg5[%c1_83, %c0_84, %c0_85] : memref<2x32x64xf32, #tpu.memory_space<vmem>>, vector<1x32x64xf32>
    %267 = vector.shape_cast %266 : vector<1x32x64xf32> to vector<32x64xf32>
    %cst_86 = arith.constant dense<0.000000e+00> : vector<16x64xf32>
    %268 = tpu.matmul %265, %267, %cst_86 {dimension_numbers = #tpu.dot_dimension_numbers<[1], [0], [0], [1], [0, 0, 1, 1], [], []>} : vector<16x32xf32>, vector<32x64xf32>, vector<16x64xf32> -> vector<16x64xf32>
    %269 = vector.broadcast %192 : vector<1x64xf32> to vector<16x64xf32>
    %270 = arith.addf %268, %269 : vector<16x64xf32>
    %271 = arith.mulf %270, %270 : vector<16x64xf32>
    %272 = arith.mulf %270, %271 : vector<16x64xf32>
    %cst_87 = arith.constant 4.471500e-02 : f32
    %273 = vector.broadcast %cst_87 : f32 to vector<16x64xf32>
    %274 = arith.mulf %273, %272 : vector<16x64xf32>
    %275 = arith.addf %270, %274 : vector<16x64xf32>
    %cst_88 = arith.constant 0.797884583 : f32
    %276 = vector.broadcast %cst_88 : f32 to vector<16x64xf32>
    %277 = arith.mulf %276, %275 : vector<16x64xf32>
    %278 = math.tanh %277 : vector<16x64xf32>
    %cst_89 = arith.constant 1.000000e+00 : f32
    %279 = vector.broadcast %cst_89 : f32 to vector<16x64xf32>
    %280 = arith.addf %279, %278 : vector<16x64xf32>
    %cst_90 = arith.constant 5.000000e-01 : f32
    %281 = vector.broadcast %cst_90 : f32 to vector<16x64xf32>
    %282 = arith.mulf %281, %280 : vector<16x64xf32>
    %283 = arith.mulf %270, %282 : vector<16x64xf32>
    %c1_91 = arith.constant 1 : index
    %c0_92 = arith.constant 0 : index
    %c0_93 = arith.constant 0 : index
    %284 = vector.load %arg6[%c1_91, %c0_92, %c0_93] : memref<2x64x32xf32, #tpu.memory_space<vmem>>, vector<1x64x32xf32>
    %285 = vector.shape_cast %284 : vector<1x64x32xf32> to vector<64x32xf32>
    %cst_94 = arith.constant dense<0.000000e+00> : vector<16x32xf32>
    %286 = tpu.matmul %283, %285, %cst_94 {dimension_numbers = #tpu.dot_dimension_numbers<[1], [0], [0], [1], [0, 0, 1, 1], [], []>} : vector<16x64xf32>, vector<64x32xf32>, vector<16x32xf32> -> vector<16x32xf32>
    %287 = vector.broadcast %193 : vector<1x32xf32> to vector<16x32xf32>
    %288 = arith.addf %286, %287 : vector<16x32xf32>
    %289 = arith.addf %288, %265 : vector<16x32xf32>
    %cst_95 = arith.constant dense<0.000000e+00> : vector<16xf32>
    %290 = vector.multi_reduction <add>, %289, %cst_95 [1] : vector<16x32xf32> to vector<16xf32>
    %291 = vector.shape_cast %290 : vector<16xf32> to vector<16x1xf32>
    %cst_96 = arith.constant 3.200000e+01 : f32
    %292 = vector.broadcast %cst_96 : f32 to vector<16x1xf32>
    %293 = arith.divf %291, %292 : vector<16x1xf32>
    %294 = arith.mulf %289, %289 : vector<16x32xf32>
    %cst_97 = arith.constant dense<0.000000e+00> : vector<16xf32>
    %295 = vector.multi_reduction <add>, %294, %cst_97 [1] : vector<16x32xf32> to vector<16xf32>
    %296 = vector.shape_cast %295 : vector<16xf32> to vector<16x1xf32>
    %cst_98 = arith.constant 3.200000e+01 : f32
    %297 = vector.broadcast %cst_98 : f32 to vector<16x1xf32>
    %298 = arith.divf %296, %297 : vector<16x1xf32>
    %299 = arith.mulf %293, %293 : vector<16x1xf32>
    %300 = arith.subf %298, %299 : vector<16x1xf32>
    %cst_99 = arith.constant 9.99999997E-7 : f32
    %301 = vector.broadcast %cst_99 : f32 to vector<16x1xf32>
    %302 = arith.addf %300, %301 : vector<16x1xf32>
    %303 = math.rsqrt %302 : vector<16x1xf32>
    %304 = vector.broadcast %303 : vector<16x1xf32> to vector<16x32xf32>
    %305 = vector.broadcast %194 : vector<1x32xf32> to vector<16x32xf32>
    %306 = arith.mulf %304, %305 : vector<16x32xf32>
    %307 = vector.broadcast %293 : vector<16x1xf32> to vector<16x32xf32>
    %308 = arith.subf %289, %307 : vector<16x32xf32>
    %309 = arith.mulf %308, %306 : vector<16x32xf32>
    %310 = vector.broadcast %195 : vector<1x32xf32> to vector<16x32xf32>
    %311 = arith.addf %309, %310 : vector<16x32xf32>
    %312 = vector.broadcast %13 : vector<16x1xf32> to vector<16x32xf32>
    %313 = arith.mulf %311, %312 : vector<16x32xf32>
    %c0_100 = arith.constant 0 : index
    %c0_101 = arith.constant 0 : index
    %314 = vector.load %arg8[%c0_100, %c0_101] : memref<16x32xf32, #tpu.memory_space<vmem>>, vector<16x32xf32>
    tpu.vector_store %arg8[%c0_100, %c0_101], %313 {strides = array<i32>} : memref<16x32xf32, #tpu.memory_space<vmem>>, vector<16x32xf32>,
    return
  }
}

</mosaic_0001>

<llo_original>
// kernel: teedam_forward.1
$region0: #{teedam_forward.1}
  #allocation0 [shape = 'u32[]', space=smem, size = 0x4, offset = 0x4, fixed_abs, tag = 'smem constant byte address 0x4 - core index']
  #allocation1 [shape = 'u32[144,128]{1,0:T(1,128)}', space=vmem, size = 0x12000, scoped, tag = 'internal scratch']
  %s0 = inlined_call_operand.vmem [shape: f32[16,4], index: 0, kind: input, shape index: {}]
  %s1 = inlined_call_operand.vmem [shape: f32[3,16], index: 1, kind: input, shape index: {}]
  %s2 = inlined_call_operand.vmem [shape: f32[11,32], index: 2, kind: input, shape index: {}]
  %s3 = inlined_call_operand.vmem [shape: f32[2,32,96], index: 3, kind: input, shape index: {}]
  %s4 = inlined_call_operand.vmem [shape: f32[2,32,32], index: 4, kind: input, shape index: {}]
  %s5 = inlined_call_operand.vmem [shape: f32[2,32,64], index: 5, kind: input, shape index: {}]
  %s6 = inlined_call_operand.vmem [shape: f32[2,64,32], index: 6, kind: input, shape index: {}]
  %s7 = inlined_call_operand.vmem [shape: f32[2,8,64], index: 7, kind: input, shape index: {}]
  %s8 = inlined_call_operand.hbm [shape: f32[16,32], index: 8, kind: output, shape index: {}]
  %s9 = sld [smem:[#allocation0]]
  $region42: #{teedam_forward.1} parent=0
    _
  %s11 = ssub.s32 1, %s9
  %s12 = scalar_select 0, %s11, %s9
  $region1: #{teedam_forward.1} parent=0
    #allocation2 [shape = 'u8[8192]{0}', space=vmem, size = 0x2000, scoped, tag = 'output window, operand 0, single buffered']
    #allocation3 [shape = 's32[1]{0}', space=sflag, size = 0x4, scoped, tag = 'scoped memory for teedam_forward.1']
    %13 = vsyncpa [#allocation3], 0
    // Predicated region
    $region2: #{teedam_forward.1} parent=1 // pred_check
      _
    $region3: #{teedam_forward.1} parent=1 // pred_check_branch
      %15 = sbr.rel (0) target = $region5
    $region4: #{teedam_forward.1} parent=1 // pred_region
      _
    $region5: #{teedam_forward.1} parent=1 // pred_fallthru
      _
    // Predicated region
    $region6: #{teedam_forward.1} parent=1 // pred_check
      _
    $region7: #{teedam_forward.1} parent=1 // pred_check_branch
      %17 = sbr.rel (0) target = $region9
    $region8: #{teedam_forward.1} parent=1 // pred_region
      _
    $region9: #{teedam_forward.1} parent=1 // pred_fallthru
      _
    // Predicated region
    $region10: #{teedam_forward.1} parent=1 // pred_check
      _
    $region11: #{teedam_forward.1} parent=1 // pred_check_branch
      %19 = sbr.rel (0) target = $region13
    $region12: #{teedam_forward.1} parent=1 // pred_region
      _
    $region13: #{teedam_forward.1} parent=1 // pred_fallthru
      _
    // Predicated region
    $region14: #{teedam_forward.1} parent=1 // pred_check
      _
    $region15: #{teedam_forward.1} parent=1 // pred_check_branch
      %21 = sbr.rel (0) target = $region17
    $region16: #{teedam_forward.1} parent=1 // pred_region
      _
    $region17: #{teedam_forward.1} parent=1 // pred_fallthru
      _
    // Predicated region
    $region18: #{teedam_forward.1} parent=1 // pred_check
      _
    $region19: #{teedam_forward.1} parent=1 // pred_check_branch
      %23 = sbr.rel (0) target = $region21
    $region20: #{teedam_forward.1} parent=1 // pred_region
      _
    $region21: #{teedam_forward.1} parent=1 // pred_fallthru
      _
    // Predicated region
    $region22: #{teedam_forward.1} parent=1 // pred_check
      _
    $region23: #{teedam_forward.1} parent=1 // pred_check_branch
      %25 = sbr.rel (0) target = $region25
    $region24: #{teedam_forward.1} parent=1 // pred_region
      _
    $region25: #{teedam_forward.1} parent=1 // pred_fallthru
      _
    // Predicated region
    $region26: #{teedam_forward.1} parent=1 // pred_check
      _
    $region27: #{teedam_forward.1} parent=1 // pred_check_branch
      %27 = sbr.rel (0) target = $region29
    $region28: #{teedam_forward.1} parent=1 // pred_region
      _
    $region29: #{teedam_forward.1} parent=1 // pred_fallthru
      _
    // Predicated region
    $region30: #{teedam_forward.1} parent=1 // pred_check
      _
    $region31: #{teedam_forward.1} parent=1 // pred_check_branch
      %29 = sbr.rel (0) target = $region33
    $region32: #{teedam_forward.1} parent=1 // pred_region
      _
    $region33: #{teedam_forward.1} parent=1 // pred_fallthru
      _
    %v30 = vld [vmem:[%s0] sm:$0xff]
    %v31 = vld [vmem:[%s0 + $0x8] sm:$0xff]
    %v32 = vld [vmem:[%s1] sm:$0x7]
    %vm33 = vcmp.ne.f32.partialorder %v30, 0.0
    %vm34 = vcmp.ne.f32.partialorder %v31, 0.0
    %v35 = vsel %vm33, 1.0, 0.0
    %v36 = vsel %vm34, 1.0, 0.0
    %38 = vset.pattern.permute.xlu0 3
    %39 = vperm.xlu0 %38, %v30
    %v40 = vpop.permute.xlu0 %39
    %43 = vset.pattern.permute.xlu0 3
    %44 = vperm.xlu0 %43, %v31
    %v45 = vpop.permute.xlu0 %44
    %v47 = vlaneseq
    %v48 = vshrl.u32 %v47, 7
    %v49 = vsub.s32 2, %v48
    %v50 = vrot.slane %v32, %v49
    %vm51 = vcmp.ne.f32.partialorder %v40, %v50
    %vm52 = vcmp.ne.f32.partialorder %v45, %v50
    %v53 = vadd.f32 %v30, 1.0
    %v54 = vadd.f32 %v31, 1.0
    %v55 = vlaneseq
    %v56 = vshrl.u32 %v55, 7
    %v57 = vsub.s32 1, %v56
    %v58 = vrot.slane %v32, %v57
    %60 = vset.pattern.permute.xlu0 2
    %61 = vperm.xlu0 %60, %v53
    %v62 = vpop.permute.xlu0 %61
    %65 = vset.pattern.permute.xlu0 2
    %66 = vperm.xlu0 %65, %v54
    %v67 = vpop.permute.xlu0 %66
    %vm69 = vcmp.ge.f32.partialorder %v58, %v62
    %vm70 = vcmp.ge.f32.partialorder %v58, %v67
    %vm71 = vmor %vm51, %vm69
    %vm72 = vmor %vm52, %vm70
    %vm73 = vcmp.eq.f32.partialorder %v32, 0.0
    %v74 = vsel %vm73, 1, 0
    %v75 = vlaneseq
    %v76 = vshrl.u32 %v75, 7
    %v77 = vsub.s32 0, %v76
    %v78 = vrot.slane %v74, %v77
    %vm79 = vcmp.eq.s32.totalorder %v78, 1
    %vm80 = vmor %vm71, %vm79
    %vm81 = vmor %vm72, %vm79
    %v82 = vsel %vm80, -1e+09, 0.0
    %v83 = vsel %vm81, -1e+09, 0.0
    %v84 = vld [vmem:[%s2] sm:$0xff]
    %v85 = vld [vmem:[%s2 + $0x8] sm:$0x7]
    %v86 = vlaneseq
    %v87 = vand.u32 %v86, 127
    %v88 = vadd.s32 %v87, 1
    %v89 = vcvt.s32.f32 %v88
    %90 = vset.pattern.permute.xlu0 0
    %91 = vperm.xlu0 %90, %v30
    %v92 = vpop.permute.xlu0 %91
    %94 = vset.pattern.permute.xlu0 0
    %95 = vperm.xlu0 %94, %v31
    %v96 = vpop.permute.xlu0 %95
    %vm98 = vcmp.eq.f32.partialorder %v92, %v89
    %vm99 = vcmp.eq.f32.partialorder %v96, %v89
    %v100 = vsel %vm98, 1.0, 0.0
    %v101 = vsel %vm99, 1.0, 0.0
    %v102 = vlaneseq
    %v103 = vshrl.u32 %v102, 7
    %v104 = vsub.s32 0, %v103
    %v105 = vrot.slane %v85, %v104
    %vm106 = vcmask 64512
    %v108 = vsel %vm106, %v100, 0
    %v111 = vsel %vm106, %v101, 0
    %113 = vmatprep.subr.mxu0 0.0
    %114 = vmatpush1.msra.mxu0 %v84
    %115 = vmatprep.subr.mxu0 0.0
    %116 = vmatpush1.msra.mxu0 0.0
    %117 = vmatprep.subr.mxu0 0.0
    %118 = vmatpush1.msra.mxu0 0.0
    %119 = vmatprep.subr.mxu0 0.0
    %120 = vmatpush1.msra.mxu0 0.0
    %121 = vmatprep.subr.mxu0 0.0
    %122 = vmatpush1.msra.mxu0 0.0
    %123 = vmatprep.subr.mxu0 0.0
    %124 = vmatpush1.msra.mxu0 0.0
    %125 = vmatprep.subr.mxu0 0.0
    %126 = vmatpush1.msra.mxu0 0.0
    %127 = vmatprep.subr.mxu0 0.0
    %128 = vmatpush1.msra.mxu0 0.0
    %129 = vmatprep.subr.mxu0 0.0
    %130 = vmatpush1.msra.mxu0 0.0
    %131 = vmatprep.subr.mxu0 0.0
    %132 = vmatpush1.msra.mxu0 0.0
    %133 = vmatprep.subr.mxu0 0.0
    %134 = vmatpush1.msra.mxu0 0.0
    %135 = vmatprep.subr.mxu0 0.0
    %136 = vmatpush1.msra.mxu0 0.0
    %137 = vmatprep.subr.mxu0 0.0
    %138 = vmatpush1.msra.mxu0 0.0
    %139 = vmatprep.subr.mxu0 0.0
    %140 = vmatpush1.msra.mxu0 0.0
    %141 = vmatprep.subr.mxu0 0.0
    %142 = vmatpush1.msra.mxu0 0.0
    %143 = vmatprep.subr.mxu0 0.0
    %144 = vmatpush1.msra.mxu0 0.0
    %145 = vmatprep.subr.mxu0 0.0
    %146 = vmatpush1.msra.mxu0 0.0
    %147 = vmatprep.subr.mxu0 0.0
    %148 = vmatpush1.msra.mxu0 0.0
    %149 = vmatprep.subr.mxu0 0.0
    %150 = vmatpush1.msra.mxu0 0.0
    %151 = vmatprep.subr.mxu0 0.0
    %152 = vmatpush1.msra.mxu0 0.0
    %153 = vmatprep.subr.mxu0 0.0
    %154 = vmatpush1.msra.mxu0 0.0
    %155 = vmatprep.subr.mxu0 0.0
    %156 = vmatpush1.msra.mxu0 0.0
    %157 = vmatprep.subr.mxu0 0.0
    %158 = vmatpush1.msra.mxu0 0.0
    %159 = vmatprep.subr.mxu0 0.0
    %160 = vmatpush1.msra.mxu0 0.0
    %161 = vmatprep.subr.mxu0 0.0
    %162 = vmatpush1.msra.mxu0 0.0
    %163 = vmatprep.subr.mxu0 0.0
    %164 = vmatpush1.msra.mxu0 0.0
    %165 = vmatprep.subr.mxu0 0.0
    %166 = vmatpush1.msra.mxu0 0.0
    %167 = vmatprep.subr.mxu0 0.0
    %168 = vmatpush1.msra.mxu0 0.0
    %169 = vmatprep.subr.mxu0 0.0
    %170 = vmatpush1.msra.mxu0 0.0
    %171 = vmatprep.subr.mxu0 0.0
    %172 = vmatpush1.msra.mxu0 0.0
    %173 = vmatprep.subr.mxu0 0.0
    %174 = vmatpush1.msra.mxu0 0.0
    %175 = vmatprep.subr.mxu0 0.0
    %176 = vmatpush1.msra.mxu0 0.0
    %177 = vmatprep.mubr.f32.mxu0 0.0
    %178 = vmatmul.mubr.f32.gmra.mrb[0].mxu0 %v108
    %v179 = vpop.f32.mrb[0].mxu0
    %v180 = vadd.f32 %v105, %v179
    %v181 = vpop.f32.mrb[0].mxu0
    %182 = vmatprep.mubr.f32.mxu0 0.0
    %183 = vmatmul.mubr.f32.gmra.mrb[0].mxu0 %v111
    %v184 = vpop.f32.mrb[0].mxu0
    %v185 = vadd.f32 %v105, %v184
    %v186 = vpop.f32.mrb[0].mxu0
    %187 = vdwg.mxu0
    %188 = vset.pattern.permute.xlu0 1
    %189 = vperm.xlu0 %188, %v30
    %v190 = vpop.permute.xlu0 %189
    %192 = vset.pattern.permute.xlu0 1
    %193 = vperm.xlu0 %192, %v31
    %v194 = vpop.permute.xlu0 %193
    %v196 = vlaneseq
    %v197 = vshrl.u32 %v196, 7
    %v198 = vsub.s32 1, %v197
    %v199 = vrot.slane %v85, %v198
    %v200 = vmul.f32 %v190, %v199
    %v201 = vmul.f32 %v194, %v199
    %vm202 = vcmp.gt.f32.partialorder %v85, 0.5
    %v203 = vand.u32 2147483647, %v200
    %vm204 = vcmp.le.f32.partialorder %v203, 0.7853982
    %vm205 = vcmp.lt.s32.totalorder %v200, 0
    %v206 = vand.u32 %v200, 2139095040
    %v207 = vshrl.u32 %v206, 23
    %v208 = vsub.s32 %v207, 127
    %v209 = vand.u32 2147483647, %v200
    %v210 = vand.u32 %v209, 8388607
    %v211 = vor.u32 %v210, 8388608
    %v212 = vsub.s32 0, %v211
    %v213 = vadd.s32 %v208, 1
    %vm214 = vcmp.gt.s32.totalorder %v213, 0
    %v215 = vsel %vm214, %v213, 0
    %v216 = vshrl.u32 %v215, 5
    %v217 = vand.u32 %v215, 31
    %v218 = vsub.s32 32, %v217
    %v219 = vshrl.u32 683565275, %v218
    %v220 = vshll.u32 683565275, %v217
    %v221 = vshrl.u32 2475754826, %v218
    %v222 = vor.u32 %v220, %v221
    %v223 = vshll.u32 2475754826, %v217
    %v224 = vshrl.u32 2131351028, %v218
    %v225 = vor.u32 %v223, %v224
    %v226 = vshll.u32 2131351028, %v217
    %v227 = vshrl.u32 2102212464, %v218
    %v228 = vor.u32 %v226, %v227
    %v229 = vshll.u32 2102212464, %v217
    %v230 = vshrl.u32 920167782, %v218
    %v231 = vor.u32 %v229, %v230
    %v232 = vshll.u32 920167782, %v217
    %v233 = vshrl.u32 1326507024, %v218
    %v234 = vor.u32 %v232, %v233
    %vm235 = vcmp.lt.s32.totalorder %v216, 1
    %vm236 = vcmp.lt.s32.totalorder %v216, 2
    %vm237 = vcmp.lt.s32.totalorder %v216, 3
    %vm238 = vcmp.lt.s32.totalorder %v216, 4
    %v239 = vsel %vm235, %v219, %v222
    %v240 = vsel %vm238, %v228, 2102212464
    %v241 = vsel %vm237, %v225, %v240
    %v242 = vsel %vm236, %v239, %v241
    %v243 = vsel %vm235, %v222, %v225
    %v244 = vsel %vm238, %v231, 920167782
    %v245 = vsel %vm237, %v228, %v244
    %v246 = vsel %vm236, %v243, %v245
    %v247 = vsel %vm235, %v225, %v228
    %v248 = vsel %vm238, %v234, 1326507024
    %v249 = vsel %vm237, %v231, %v248
    %v250 = vsel %vm236, %v247, %v249
    %v251 = vshll.u32 %v211, 8
    %v252 = vmul.u32.u64.compose %v251, %v250
    %v253 = vextract.low.u32 %v252
    %v254 = vextract.high.u32 %v252
    %v255 = vmul.u32.u64.compose %v251, %v246
    %v256 = vextract.low.u32 %v255
    %v257 = vextract.high.u32 %v255
    %v258 = vmul.u32 %v251, %v242
    %v259 = vadd.s32 %v254, %v256
    %vm260 = vc.u32 %v254, %v256
    %v261 = vadd.s32 %v257, 1
    %v262 = vsel %vm260, %v261, %v257
    %v263 = vadd.s32 %v258, %v262
    %v264 = vadd.s32 %v263, 536870912
    %v265 = vshrl.u32 %v264, 30
    %v266 = vshll.u32 %v265, 30
    %v267 = vsub.s32 %v263, %v266
    %vm268 = vcmp.lt.s32.totalorder %v267, 0
    %v269 = vsub.s32 0, %v267
    %v270 = vsel %vm268, %v269, %v267
    %v271 = vclz %v270
    %v272 = vsub.s32 %v271, 2
    %vm273 = vcmp.gt.s32.totalorder 0, %v272
    %v274 = vsel %vm273, 0, %v272
    %v275 = vsub.s32 32, %v274
    %v276 = vshll.u32 %v267, %v274
    %v277 = vshrl.u32 %v259, %v275
    %v278 = vor.u32 %v276, %v277
    %v279 = vsub.s32 4294967266, %v274
    %v280 = vadd.s32 %v279, 127
    %v281 = vshll.u32 %v280, 23
    %v282 = vor.u32 4788187, %v281
    %v283 = vand.u32 2147483647, %v282
    %v285 = vcvt.s32.f32 %v278
    %v286 = vmul.f32 %v285, %v283
    %v287 = vxor.u32 %v286, 2147483648
    %v288 = vsel %vm205, %v287, %v286
    %v289 = vsub.s32 4, %v265
    %v290 = vsel %vm205, %v289, %v265
    %v291 = vsel %vm204, %v200, %v288
    %v292 = vsel %vm204, 0, %v290
    %v293 = vcosq.f32.pop %v291
    %v294 = vsinq.f32.pop %v291
    %vm295 = vweird.f32 %v200
    %v296 = vadd.s32 %v292, 3
    %v297 = vand.u32 %v296, 3
    %vm298 = vcmp.lt.s32.totalorder %v297, 2
    %vm299 = vcmp.eq.s32.totalorder %v297, 0
    %v300 = vxor.u32 %v294, 2147483648
    %v301 = vsel %vm299, %v293, %v300
    %vm302 = vcmp.eq.s32.totalorder %v297, 2
    %v303 = vxor.u32 %v293, 2147483648
    %v304 = vsel %vm302, %v303, %v294
    %v305 = vsel %vm298, %v301, %v304
    %v306 = vsel %vm295, nan, %v305
    %v307 = vand.u32 2147483647, %v201
    %vm308 = vcmp.le.f32.partialorder %v307, 0.7853982
    %vm309 = vcmp.lt.s32.totalorder %v201, 0
    %v310 = vand.u32 %v201, 2139095040
    %v311 = vshrl.u32 %v310, 23
    %v312 = vsub.s32 %v311, 127
    %v313 = vand.u32 2147483647, %v201
    %v314 = vand.u32 %v313, 8388607
    %v315 = vor.u32 %v314, 8388608
    %v316 = vsub.s32 0, %v315
    %v317 = vadd.s32 %v312, 1
    %vm318 = vcmp.gt.s32.totalorder %v317, 0
    %v319 = vsel %vm318, %v317, 0
    %v320 = vshrl.u32 %v319, 5
    %v321 = vand.u32 %v319, 31
    %v322 = vsub.s32 32, %v321
    %v323 = vshrl.u32 683565275, %v322
    %v324 = vshll.u32 683565275, %v321
    %v325 = vshrl.u32 2475754826, %v322
    %v326 = vor.u32 %v324, %v325
    %v327 = vshll.u32 2475754826, %v321
    %v328 = vshrl.u32 2131351028, %v322
    %v329 = vor.u32 %v327, %v328
    %v330 = vshll.u32 2131351028, %v321
    %v331 = vshrl.u32 2102212464, %v322
    %v332 = vor.u32 %v330, %v331
    %v333 = vshll.u32 2102212464, %v321
    %v334 = vshrl.u32 920167782, %v322
    %v335 = vor.u32 %v333, %v334
    %v336 = vshll.u32 920167782, %v321
    %v337 = vshrl.u32 1326507024, %v322
    %v338 = vor.u32 %v336, %v337
    %vm339 = vcmp.lt.s32.totalorder %v320, 1
    %vm340 = vcmp.lt.s32.totalorder %v320, 2
    %vm341 = vcmp.lt.s32.totalorder %v320, 3
    %vm342 = vcmp.lt.s32.totalorder %v320, 4
    %v343 = vsel %vm339, %v323, %v326
    %v344 = vsel %vm342, %v332, 2102212464
    %v345 = vsel %vm341, %v329, %v344
    %v346 = vsel %vm340, %v343, %v345
    %v347 = vsel %vm339, %v326, %v329
    %v348 = vsel %vm342, %v335, 920167782
    %v349 = vsel %vm341, %v332, %v348
    %v350 = vsel %vm340, %v347, %v349
    %v351 = vsel %vm339, %v329, %v332
    %v352 = vsel %vm342, %v338, 1326507024
    %v353 = vsel %vm341, %v335, %v352
    %v354 = vsel %vm340, %v351, %v353
    %v355 = vshll.u32 %v315, 8
    %v356 = vmul.u32.u64.compose %v355, %v354
    %v357 = vextract.low.u32 %v356
    %v358 = vextract.high.u32 %v356
    %v359 = vmul.u32.u64.compose %v355, %v350
    %v360 = vextract.low.u32 %v359
    %v361 = vextract.high.u32 %v359
    %v362 = vmul.u32 %v355, %v346
    %v363 = vadd.s32 %v358, %v360
    %vm364 = vc.u32 %v358, %v360
    %v365 = vadd.s32 %v361, 1
    %v366 = vsel %vm364, %v365, %v361
    %v367 = vadd.s32 %v362, %v366
    %v368 = vadd.s32 %v367, 536870912
    %v369 = vshrl.u32 %v368, 30
    %v370 = vshll.u32 %v369, 30
    %v371 = vsub.s32 %v367, %v370
    %vm372 = vcmp.lt.s32.totalorder %v371, 0
    %v373 = vsub.s32 0, %v371
    %v374 = vsel %vm372, %v373, %v371
    %v375 = vclz %v374
    %v376 = vsub.s32 %v375, 2
    %vm377 = vcmp.gt.s32.totalorder 0, %v376
    %v378 = vsel %vm377, 0, %v376
    %v379 = vsub.s32 32, %v378
    %v380 = vshll.u32 %v371, %v378
    %v381 = vshrl.u32 %v363, %v379
    %v382 = vor.u32 %v380, %v381
    %v383 = vsub.s32 4294967266, %v378
    %v384 = vadd.s32 %v383, 127
    %v385 = vshll.u32 %v384, 23
    %v386 = vor.u32 4788187, %v385
    %v387 = vand.u32 2147483647, %v386
    %v389 = vcvt.s32.f32 %v382
    %v390 = vmul.f32 %v389, %v387
    %v391 = vxor.u32 %v390, 2147483648
    %v392 = vsel %vm309, %v391, %v390
    %v393 = vsub.s32 4, %v369
    %v394 = vsel %vm309, %v393, %v369
    %v395 = vsel %vm308, %v201, %v392
    %v396 = vsel %vm308, 0, %v394
    %v397 = vcosq.f32.pop %v395
    %v398 = vsinq.f32.pop %v395
    %vm399 = vweird.f32 %v201
    %v400 = vadd.s32 %v396, 3
    %v401 = vand.u32 %v400, 3
    %vm402 = vcmp.lt.s32.totalorder %v401, 2
    %vm403 = vcmp.eq.s32.totalorder %v401, 0
    %v404 = vxor.u32 %v398, 2147483648
    %v405 = vsel %vm403, %v397, %v404
    %vm406 = vcmp.eq.s32.totalorder %v401, 2
    %v407 = vxor.u32 %v397, 2147483648
    %v408 = vsel %vm406, %v407, %v398
    %v409 = vsel %vm402, %v405, %v408
    %v410 = vsel %vm399, nan, %v409
    %v411 = vand.u32 2147483647, %v200
    %vm412 = vcmp.le.f32.partialorder %v411, 0.7853982
    %vm413 = vcmp.lt.s32.totalorder %v200, 0
    %v414 = vand.u32 %v200, 2139095040
    %v415 = vshrl.u32 %v414, 23
    %v416 = vsub.s32 %v415, 127
    %v417 = vand.u32 2147483647, %v200
    %v418 = vand.u32 %v417, 8388607
    %v419 = vor.u32 %v418, 8388608
    %v420 = vsub.s32 0, %v419
    %v421 = vadd.s32 %v416, 1
    %vm422 = vcmp.gt.s32.totalorder %v421, 0
    %v423 = vsel %vm422, %v421, 0
    %v424 = vshrl.u32 %v423, 5
    %v425 = vand.u32 %v423, 31
    %v426 = vsub.s32 32, %v425
    %v427 = vshrl.u32 683565275, %v426
    %v428 = vshll.u32 683565275, %v425
    %v429 = vshrl.u32 2475754826, %v426
    %v430 = vor.u32 %v428, %v429
    %v431 = vshll.u32 2475754826, %v425
    %v432 = vshrl.u32 2131351028, %v426
    %v433 = vor.u32 %v431, %v432
    %v434 = vshll.u32 2131351028, %v425
    %v435 = vshrl.u32 2102212464, %v426
    %v436 = vor.u32 %v434, %v435
    %v437 = vshll.u32 2102212464, %v425
    %v438 = vshrl.u32 920167782, %v426
    %v439 = vor.u32 %v437, %v438
    %v440 = vshll.u32 920167782, %v425
    %v441 = vshrl.u32 1326507024, %v426
    %v442 = vor.u32 %v440, %v441
    %vm443 = vcmp.lt.s32.totalorder %v424, 1
    %vm444 = vcmp.lt.s32.totalorder %v424, 2
    %vm445 = vcmp.lt.s32.totalorder %v424, 3
    %vm446 = vcmp.lt.s32.totalorder %v424, 4
    %v447 = vsel %vm443, %v427, %v430
    %v448 = vsel %vm446, %v436, 2102212464
    %v449 = vsel %vm445, %v433, %v448
    %v450 = vsel %vm444, %v447, %v449
    %v451 = vsel %vm443, %v430, %v433
    %v452 = vsel %vm446, %v439, 920167782
    %v453 = vsel %vm445, %v436, %v452
    %v454 = vsel %vm444, %v451, %v453
    %v455 = vsel %vm443, %v433, %v436
    %v456 = vsel %vm446, %v442, 1326507024
    %v457 = vsel %vm445, %v439, %v456
    %v458 = vsel %vm444, %v455, %v457
    %v459 = vshll.u32 %v419, 8
    %v460 = vmul.u32.u64.compose %v459, %v458
    %v461 = vextract.low.u32 %v460
    %v462 = vextract.high.u32 %v460
    %v463 = vmul.u32.u64.compose %v459, %v454
    %v464 = vextract.low.u32 %v463
    %v465 = vextract.high.u32 %v463
    %v466 = vmul.u32 %v459, %v450
    %v467 = vadd.s32 %v462, %v464
    %vm468 = vc.u32 %v462, %v464
    %v469 = vadd.s32 %v465, 1
    %v470 = vsel %vm468, %v469, %v465
    %v471 = vadd.s32 %v466, %v470
    %v472 = vadd.s32 %v471, 536870912
    %v473 = vshrl.u32 %v472, 30
    %v474 = vshll.u32 %v473, 30
    %v475 = vsub.s32 %v471, %v474
    %vm476 = vcmp.lt.s32.totalorder %v475, 0
    %v477 = vsub.s32 0, %v475
    %v478 = vsel %vm476, %v477, %v475
    %v479 = vclz %v478
    %v480 = vsub.s32 %v479, 2
    %vm481 = vcmp.gt.s32.totalorder 0, %v480
    %v482 = vsel %vm481, 0, %v480
    %v483 = vsub.s32 32, %v482
    %v484 = vshll.u32 %v475, %v482
    %v485 = vshrl.u32 %v467, %v483
    %v486 = vor.u32 %v484, %v485
    %v487 = vsub.s32 4294967266, %v482
    %v488 = vadd.s32 %v487, 127
    %v489 = vshll.u32 %v488, 23
    %v490 = vor.u32 4788187, %v489
    %v491 = vand.u32 2147483647, %v490
    %v493 = vcvt.s32.f32 %v486
    %v494 = vmul.f32 %v493, %v491
    %v495 = vxor.u32 %v494, 2147483648
    %v496 = vsel %vm413, %v495, %v494
    %v497 = vsub.s32 4, %v473
    %v498 = vsel %vm413, %v497, %v473
    %v499 = vsel %vm412, %v200, %v496
    %v500 = vsel %vm412, 0, %v498
    %v501 = vcosq.f32.pop %v499
    %v502 = vsinq.f32.pop %v499
    %vm503 = vweird.f32 %v200
    %v504 = vand.u32 %v500, 3
    %vm505 = vcmp.lt.s32.totalorder %v504, 2
    %vm506 = vcmp.eq.s32.totalorder %v504, 0
    %v507 = vxor.u32 %v502, 2147483648
    %v508 = vsel %vm506, %v501, %v507
    %vm509 = vcmp.eq.s32.totalorder %v504, 2
    %v510 = vxor.u32 %v501, 2147483648
    %v511 = vsel %vm509, %v510, %v502
    %v512 = vsel %vm505, %v508, %v511
    %v513 = vsel %vm503, nan, %v512
    %v514 = vand.u32 2147483647, %v201
    %vm515 = vcmp.le.f32.partialorder %v514, 0.7853982
    %vm516 = vcmp.lt.s32.totalorder %v201, 0
    %v517 = vand.u32 %v201, 2139095040
    %v518 = vshrl.u32 %v517, 23
    %v519 = vsub.s32 %v518, 127
    %v520 = vand.u32 2147483647, %v201
    %v521 = vand.u32 %v520, 8388607
    %v522 = vor.u32 %v521, 8388608
    %v523 = vsub.s32 0, %v522
    %v524 = vadd.s32 %v519, 1
    %vm525 = vcmp.gt.s32.totalorder %v524, 0
    %v526 = vsel %vm525, %v524, 0
    %v527 = vshrl.u32 %v526, 5
    %v528 = vand.u32 %v526, 31
    %v529 = vsub.s32 32, %v528
    %v530 = vshrl.u32 683565275, %v529
    %v531 = vshll.u32 683565275, %v528
    %v532 = vshrl.u32 2475754826, %v529
    %v533 = vor.u32 %v531, %v532
    %v534 = vshll.u32 2475754826, %v528
    %v535 = vshrl.u32 2131351028, %v529
    %v536 = vor.u32 %v534, %v535
    %v537 = vshll.u32 2131351028, %v528
    %v538 = vshrl.u32 2102212464, %v529
    %v539 = vor.u32 %v537, %v538
    %v540 = vshll.u32 2102212464, %v528
    %v541 = vshrl.u32 920167782, %v529
    %v542 = vor.u32 %v540, %v541
    %v543 = vshll.u32 920167782, %v528
    %v544 = vshrl.u32 1326507024, %v529
    %v545 = vor.u32 %v543, %v544
    %vm546 = vcmp.lt.s32.totalorder %v527, 1
    %vm547 = vcmp.lt.s32.totalorder %v527, 2
    %vm548 = vcmp.lt.s32.totalorder %v527, 3
    %vm549 = vcmp.lt.s32.totalorder %v527, 4
    %v550 = vsel %vm546, %v530, %v533
    %v551 = vsel %vm549, %v539, 2102212464
    %v552 = vsel %vm548, %v536, %v551
    %v553 = vsel %vm547, %v550, %v552
    %v554 = vsel %vm546, %v533, %v536
    %v555 = vsel %vm549, %v542, 920167782
    %v556 = vsel %vm548, %v539, %v555
    %v557 = vsel %vm547, %v554, %v556
    %v558 = vsel %vm546, %v536, %v539
    %v559 = vsel %vm549, %v545, 1326507024
    %v560 = vsel %vm548, %v542, %v559
    %v561 = vsel %vm547, %v558, %v560
    %v562 = vshll.u32 %v522, 8
    %v563 = vmul.u32.u64.compose %v562, %v561
    %v564 = vextract.low.u32 %v563
    %v565 = vextract.high.u32 %v563
    %v566 = vmul.u32.u64.compose %v562, %v557
    %v567 = vextract.low.u32 %v566
    %v568 = vextract.high.u32 %v566
    %v569 = vmul.u32 %v562, %v553
    %v570 = vadd.s32 %v565, %v567
    %vm571 = vc.u32 %v565, %v567
    %v572 = vadd.s32 %v568, 1
    %v573 = vsel %vm571, %v572, %v568
    %v574 = vadd.s32 %v569, %v573
    %v575 = vadd.s32 %v574, 536870912
    %v576 = vshrl.u32 %v575, 30
    %v577 = vshll.u32 %v576, 30
    %v578 = vsub.s32 %v574, %v577
    %vm579 = vcmp.lt.s32.totalorder %v578, 0
    %v580 = vsub.s32 0, %v578
    %v581 = vsel %vm579, %v580, %v578
    %v582 = vclz %v581
    %v583 = vsub.s32 %v582, 2
    %vm584 = vcmp.gt.s32.totalorder 0, %v583
    %v585 = vsel %vm584, 0, %v583
    %v586 = vsub.s32 32, %v585
    %v587 = vshll.u32 %v578, %v585
    %v588 = vshrl.u32 %v570, %v586
    %v589 = vor.u32 %v587, %v588
    %v590 = vsub.s32 4294967266, %v585
    %v591 = vadd.s32 %v590, 127
    %v592 = vshll.u32 %v591, 23
    %v593 = vor.u32 4788187, %v592
    %v594 = vand.u32 2147483647, %v593
    %v596 = vcvt.s32.f32 %v589
    %v597 = vmul.f32 %v596, %v594
    %v598 = vxor.u32 %v597, 2147483648
    %v599 = vsel %vm516, %v598, %v597
    %v600 = vsub.s32 4, %v576
    %v601 = vsel %vm516, %v600, %v576
    %v602 = vsel %vm515, %v201, %v599
    %v603 = vsel %vm515, 0, %v601
    %v604 = vcosq.f32.pop %v602
    %v605 = vsinq.f32.pop %v602
    %vm606 = vweird.f32 %v201
    %v607 = vand.u32 %v603, 3
    %vm608 = vcmp.lt.s32.totalorder %v607, 2
    %vm609 = vcmp.eq.s32.totalorder %v607, 0
    %v610 = vxor.u32 %v605, 2147483648
    %v611 = vsel %vm609, %v604, %v610
    %vm612 = vcmp.eq.s32.totalorder %v607, 2
    %v613 = vxor.u32 %v604, 2147483648
    %v614 = vsel %vm612, %v613, %v605
    %v615 = vsel %vm608, %v611, %v614
    %v616 = vsel %vm606, nan, %v615
    %v617 = vsel %vm202, 1, 0
    %v618 = vlaneseq
    %v619 = vshrl.u32 %v618, 7
    %v620 = vsub.s32 2, %v619
    %v621 = vrot.slane %v617, %v620
    %vm622 = vcmp.eq.s32.totalorder %v621, 1
    %v623 = vsel %vm622, %v306, %v513
    %v624 = vsel %vm622, %v410, %v616
    %626 = vset.pattern.permute.xlu0 0
    %627 = vperm.xlu0 %626, %v35
    %v628 = vpop.permute.xlu0 %627
    %631 = vset.pattern.permute.xlu0 0
    %632 = vperm.xlu0 %631, %v36
    %v633 = vpop.permute.xlu0 %632
    %v635 = vmul.f32 %v623, %v628
    %v636 = vmul.f32 %v624, %v633
    %v637 = vadd.f32 %v180, %v635
    %v638 = vadd.f32 %v185, %v636
    %v639 = vld [vmem:[%s7] sm:$0xff]
    %v640 = vld [vmem:[%s3] sm:$0xff]
    %v641 = vld [vmem:[%s3 + $0x8] sm:$0xff]
    %v642 = vld [vmem:[%s3 + $0x10] sm:$0xff]
    %v643 = vld [vmem:[%s3 + $0x18] sm:$0xff]
    %vm644 = vcmask 261120
    %v646 = vsel %vm644, %v637, 0
    %v649 = vsel %vm644, %v638, 0
    %651 = vmatprep.subr.mxu0 0.0
    %652 = vmatpush1.msra.mxu0 %v640
    %653 = vmatprep.subr.mxu0 0.0
    %654 = vmatpush1.msra.mxu0 %v641
    %655 = vmatprep.subr.mxu0 0.0
    %656 = vmatpush1.msra.mxu0 %v642
    %657 = vmatprep.subr.mxu0 0.0
    %658 = vmatpush1.msra.mxu0 %v643
    %659 = vmatprep.subr.mxu0 0.0
    %660 = vmatpush1.msra.mxu0 0.0
    %661 = vmatprep.subr.mxu0 0.0
    %662 = vmatpush1.msra.mxu0 0.0
    %663 = vmatprep.subr.mxu0 0.0
    %664 = vmatpush1.msra.mxu0 0.0
    %665 = vmatprep.subr.mxu0 0.0
    %666 = vmatpush1.msra.mxu0 0.0
    %667 = vmatprep.subr.mxu0 0.0
    %668 = vmatpush1.msra.mxu0 0.0
    %669 = vmatprep.subr.mxu0 0.0
    %670 = vmatpush1.msra.mxu0 0.0
    %671 = vmatprep.subr.mxu0 0.0
    %672 = vmatpush1.msra.mxu0 0.0
    %673 = vmatprep.subr.mxu0 0.0
    %674 = vmatpush1.msra.mxu0 0.0
    %675 = vmatprep.subr.mxu0 0.0
    %676 = vmatpush1.msra.mxu0 0.0
    %677 = vmatprep.subr.mxu0 0.0
    %678 = vmatpush1.msra.mxu0 0.0
    %679 = vmatprep.subr.mxu0 0.0
    %680 = vmatpush1.msra.mxu0 0.0
    %681 = vmatprep.subr.mxu0 0.0
    %682 = vmatpush1.msra.mxu0 0.0
    %683 = vmatprep.subr.mxu0 0.0
    %684 = vmatpush1.msra.mxu0 0.0
    %685 = vmatprep.subr.mxu0 0.0
    %686 = vmatpush1.msra.mxu0 0.0
    %687 = vmatprep.subr.mxu0 0.0
    %688 = vmatpush1.msra.mxu0 0.0
    %689 = vmatprep.subr.mxu0 0.0
    %690 = vmatpush1.msra.mxu0 0.0
    %691 = vmatprep.subr.mxu0 0.0
    %692 = vmatpush1.msra.mxu0 0.0
    %693 = vmatprep.subr.mxu0 0.0
    %694 = vmatpush1.msra.mxu0 0.0
    %695 = vmatprep.subr.mxu0 0.0
    %696 = vmatpush1.msra.mxu0 0.0
    %697 = vmatprep.subr.mxu0 0.0
    %698 = vmatpush1.msra.mxu0 0.0
    %699 = vmatprep.subr.mxu0 0.0
    %700 = vmatpush1.msra.mxu0 0.0
    %701 = vmatprep.subr.mxu0 0.0
    %702 = vmatpush1.msra.mxu0 0.0
    %703 = vmatprep.subr.mxu0 0.0
    %704 = vmatpush1.msra.mxu0 0.0
    %705 = vmatprep.subr.mxu0 0.0
    %706 = vmatpush1.msra.mxu0 0.0
    %707 = vmatprep.subr.mxu0 0.0
    %708 = vmatpush1.msra.mxu0 0.0
    %709 = vmatprep.subr.mxu0 0.0
    %710 = vmatpush1.msra.mxu0 0.0
    %711 = vmatprep.subr.mxu0 0.0
    %712 = vmatpush1.msra.mxu0 0.0
    %713 = vmatprep.subr.mxu0 0.0
    %714 = vmatpush1.msra.mxu0 0.0
    %715 = vmatprep.mubr.f32.mxu0 0.0
    %716 = vmatmul.mubr.f32.gmra.mrb[0].mxu0 %v646
    %v717 = vpop.f32.mrb[0].mxu0
    %v718 = vadd.f32 0.0, %v717
    %v719 = vpop.f32.mrb[0].mxu0
    %720 = vmatprep.mubr.f32.mxu0 0.0
    %721 = vmatmul.mubr.f32.gmra.mrb[0].mxu0 %v649
    %v722 = vpop.f32.mrb[0].mxu0
    %v723 = vadd.f32 0.0, %v722
    %v724 = vpop.f32.mrb[0].mxu0
    %725 = vdwg.mxu0
    %728 = vrot.lane.b32.xlu0 %v718, 96
    %v729 = vpop.permute.xlu0 %728
    %730 = vrot.lane.b32.xlu0 %v723, 96
    %v731 = vpop.permute.xlu0 %730
    %vm732 = vcmask 130048
    %v733 = vsel %vm732, %v718, 0
    %v735 = vsel %vm732, %v723, 0
    %v737 = vsel %vm732, %v729, 0
    %v739 = vsel %vm732, %v731, 0
    %741 = vmatprep.subr.mxu0 0.0
    %742 = vmatpush1.xpose.msra.mxu0 %v737
    %743 = vmatprep.subr.mxu0 0.0
    %744 = vmatpush1.xpose.msra.mxu0 %v739
    %745 = vmatprep.subr.mxu0 0.0
    %746 = vmatpush1.xpose.msra.mxu0 0.0
    %747 = vmatprep.subr.mxu0 0.0
    %748 = vmatpush1.xpose.msra.mxu0 0.0
    %749 = vmatprep.subr.mxu0 0.0
    %750 = vmatpush1.xpose.msra.mxu0 0.0
    %751 = vmatprep.subr.mxu0 0.0
    %752 = vmatpush1.xpose.msra.mxu0 0.0
    %753 = vmatprep.subr.mxu0 0.0
    %754 = vmatpush1.xpose.msra.mxu0 0.0
    %755 = vmatprep.subr.mxu0 0.0
    %756 = vmatpush1.xpose.msra.mxu0 0.0
    %757 = vmatprep.subr.mxu0 0.0
    %758 = vmatpush1.xpose.msra.mxu0 0.0
    %759 = vmatprep.subr.mxu0 0.0
    %760 = vmatpush1.xpose.msra.mxu0 0.0
    %761 = vmatprep.subr.mxu0 0.0
    %762 = vmatpush1.xpose.msra.mxu0 0.0
    %763 = vmatprep.subr.mxu0 0.0
    %764 = vmatpush1.xpose.msra.mxu0 0.0
    %765 = vmatprep.subr.mxu0 0.0
    %766 = vmatpush1.xpose.msra.mxu0 0.0
    %767 = vmatprep.subr.mxu0 0.0
    %768 = vmatpush1.xpose.msra.mxu0 0.0
    %769 = vmatprep.subr.mxu0 0.0
    %770 = vmatpush1.xpose.msra.mxu0 0.0
    %771 = vmatprep.subr.mxu0 0.0
    %772 = vmatpush1.xpose.msra.mxu0 0.0
    %773 = vmatprep.subr.mxu0 0.0
    %774 = vmatpush1.xpose.msra.mxu0 0.0
    %775 = vmatprep.subr.mxu0 0.0
    %776 = vmatpush1.xpose.msra.mxu0 0.0
    %777 = vmatprep.subr.mxu0 0.0
    %778 = vmatpush1.xpose.msra.mxu0 0.0
    %779 = vmatprep.subr.mxu0 0.0
    %780 = vmatpush1.xpose.msra.mxu0 0.0
    %781 = vmatprep.subr.mxu0 0.0
    %782 = vmatpush1.xpose.msra.mxu0 0.0
    %783 = vmatprep.subr.mxu0 0.0
    %784 = vmatpush1.xpose.msra.mxu0 0.0
    %785 = vmatprep.subr.mxu0 0.0
    %786 = vmatpush1.xpose.msra.mxu0 0.0
    %787 = vmatprep.subr.mxu0 0.0
    %788 = vmatpush1.xpose.msra.mxu0 0.0
    %789 = vmatprep.subr.mxu0 0.0
    %790 = vmatpush1.xpose.msra.mxu0 0.0
    %791 = vmatprep.subr.mxu0 0.0
    %792 = vmatpush1.xpose.msra.mxu0 0.0
    %793 = vmatprep.subr.mxu0 0.0
    %794 = vmatpush1.xpose.msra.mxu0 0.0
    %795 = vmatprep.subr.mxu0 0.0
    %796 = vmatpush1.xpose.msra.mxu0 0.0
    %797 = vmatprep.subr.mxu0 0.0
    %798 = vmatpush1.xpose.msra.mxu0 0.0
    %799 = vmatprep.subr.mxu0 0.0
    %800 = vmatpush1.xpose.msra.mxu0 0.0
    %801 = vmatprep.subr.mxu0 0.0
    %802 = vmatpush1.xpose.msra.mxu0 0.0
    %803 = vmatprep.subr.mxu0 0.0
    %804 = vmatpush1.xpose.msra.mxu0 0.0
    %805 = vmatprep.mubr.f32.mxu0 0.0
    %806 = vmatmul.mubr.f32.gmra.mrb[0].mxu0 %v733
    %v807 = vpop.f32.mrb[0].mxu0
    %v808 = vadd.f32 0.0, %v807
    %v809 = vpop.f32.mrb[0].mxu0
    %810 = vmatprep.mubr.f32.mxu0 0.0
    %811 = vmatmul.mubr.f32.gmra.mrb[0].mxu0 %v735
    %v812 = vpop.f32.mrb[0].mxu0
    %v813 = vadd.f32 0.0, %v812
    %v814 = vpop.f32.mrb[0].mxu0
    %815 = vdwg.mxu0
    %v816 = vmul.f32 %v808, 0.25
    %v817 = vmul.f32 %v813, 0.25
    %v818 = vadd.f32 %v816, %v82
    %v819 = vadd.f32 %v817, %v83
    %v820 = vsel %vm732, %v818, -inf
    %821 = vmax.xlane.f32.xlu0 %v820
    %v822 = vpop.xlane.xlu0 %821
    %v823 = vsel %vm732, %v819, -inf
    %824 = vmax.xlane.f32.xlu0 %v823
    %v825 = vpop.xlane.xlu0 %824
    %v826 = vsub.f32 %v818, %v822
    %v827 = vsub.f32 %v819, %v825
    %v828 = vmul.f32 %v826, 1.442695
    %v829 = vpow.pop %v828
    %v830 = vmul.f32 %v827, 1.442695
    %v831 = vpow.pop %v830
    %v832 = vsel %vm732, %v829, 0.0
    %833 = vadd.xlane.f32.xlu0 %v832
    %v834 = vpop.xlane.xlu0 %833
    %v835 = vsel %vm732, %v831, 0.0
    %836 = vadd.xlane.f32.xlu0 %v835
    %v837 = vpop.xlane.xlu0 %836
    %v838 = vrcp.pop %v834
    %v839 = vrcp.pop %v837
    %v840 = vmul.f32 %v829, %v838
    %v841 = vmul.f32 %v831, %v839
    %842 = vrot.lane.b32.xlu0 %v718, 64
    %v843 = vpop.permute.xlu0 %842
    %844 = vrot.lane.b32.xlu0 %v723, 64
    %v845 = vpop.permute.xlu0 %844
    %v849 = vsel %vm732, %v840, 0
    %v852 = vsel %vm732, %v841, 0
    %854 = vmatprep.subr.mxu0 0.0
    %855 = vmatpush1.msra.mxu0 %v843
    %856 = vmatprep.subr.mxu0 0.0
    %857 = vmatpush1.msra.mxu0 %v845
    %858 = vmatprep.subr.mxu0 0.0
    %859 = vmatpush1.msra.mxu0 0.0
    %860 = vmatprep.subr.mxu0 0.0
    %861 = vmatpush1.msra.mxu0 0.0
    %862 = vmatprep.subr.mxu0 0.0
    %863 = vmatpush1.msra.mxu0 0.0
    %864 = vmatprep.subr.mxu0 0.0
    %865 = vmatpush1.msra.mxu0 0.0
    %866 = vmatprep.subr.mxu0 0.0
    %867 = vmatpush1.msra.mxu0 0.0
    %868 = vmatprep.subr.mxu0 0.0
    %869 = vmatpush1.msra.mxu0 0.0
    %870 = vmatprep.subr.mxu0 0.0
    %871 = vmatpush1.msra.mxu0 0.0
    %872 = vmatprep.subr.mxu0 0.0
    %873 = vmatpush1.msra.mxu0 0.0
    %874 = vmatprep.subr.mxu0 0.0
    %875 = vmatpush1.msra.mxu0 0.0
    %876 = vmatprep.subr.mxu0 0.0
    %877 = vmatpush1.msra.mxu0 0.0
    %878 = vmatprep.subr.mxu0 0.0
    %879 = vmatpush1.msra.mxu0 0.0
    %880 = vmatprep.subr.mxu0 0.0
    %881 = vmatpush1.msra.mxu0 0.0
    %882 = vmatprep.subr.mxu0 0.0
    %883 = vmatpush1.msra.mxu0 0.0
    %884 = vmatprep.subr.mxu0 0.0
    %885 = vmatpush1.msra.mxu0 0.0
    %886 = vmatprep.subr.mxu0 0.0
    %887 = vmatpush1.msra.mxu0 0.0
    %888 = vmatprep.subr.mxu0 0.0
    %889 = vmatpush1.msra.mxu0 0.0
    %890 = vmatprep.subr.mxu0 0.0
    %891 = vmatpush1.msra.mxu0 0.0
    %892 = vmatprep.subr.mxu0 0.0
    %893 = vmatpush1.msra.mxu0 0.0
    %894 = vmatprep.subr.mxu0 0.0
    %895 = vmatpush1.msra.mxu0 0.0
    %896 = vmatprep.subr.mxu0 0.0
    %897 = vmatpush1.msra.mxu0 0.0
    %898 = vmatprep.subr.mxu0 0.0
    %899 = vmatpush1.msra.mxu0 0.0
    %900 = vmatprep.subr.mxu0 0.0
    %901 = vmatpush1.msra.mxu0 0.0
    %902 = vmatprep.subr.mxu0 0.0
    %903 = vmatpush1.msra.mxu0 0.0
    %904 = vmatprep.subr.mxu0 0.0
    %905 = vmatpush1.msra.mxu0 0.0
    %906 = vmatprep.subr.mxu0 0.0
    %907 = vmatpush1.msra.mxu0 0.0
    %908 = vmatprep.subr.mxu0 0.0
    %909 = vmatpush1.msra.mxu0 0.0
    %910 = vmatprep.subr.mxu0 0.0
    %911 = vmatpush1.msra.mxu0 0.0
    %912 = vmatprep.subr.mxu0 0.0
    %913 = vmatpush1.msra.mxu0 0.0
    %914 = vmatprep.subr.mxu0 0.0
    %915 = vmatpush1.msra.mxu0 0.0
    %916 = vmatprep.subr.mxu0 0.0
    %917 = vmatpush1.msra.mxu0 0.0
    %918 = vmatprep.mubr.f32.mxu0 0.0
    %919 = vmatmul.mubr.f32.gmra.mrb[0].mxu0 %v849
    %v920 = vpop.f32.mrb[0].mxu0
    %v921 = vadd.f32 0.0, %v920
    %v922 = vpop.f32.mrb[0].mxu0
    %923 = vmatprep.mubr.f32.mxu0 0.0
    %924 = vmatmul.mubr.f32.gmra.mrb[0].mxu0 %v852
    %v925 = vpop.f32.mrb[0].mxu0
    %v926 = vadd.f32 0.0, %v925
    %v927 = vpop.f32.mrb[0].mxu0
    %928 = vdwg.mxu0
    %929 = vrot.lane.b32.xlu0 %v718, 112
    %v930 = vpop.permute.xlu0 %929
    %931 = vrot.lane.b32.xlu0 %v723, 112
    %v932 = vpop.permute.xlu0 %931
    %933 = vrot.lane.b32.xlu0 %v718, 80
    %v934 = vpop.permute.xlu0 %933
    %935 = vrot.lane.b32.xlu0 %v723, 80
    %v936 = vpop.permute.xlu0 %935
    %v937 = vsel %vm732, %v930, 0
    %v939 = vsel %vm732, %v932, 0
    %v941 = vsel %vm732, %v934, 0
    %v943 = vsel %vm732, %v936, 0
    %945 = vmatprep.subr.mxu0 0.0
    %946 = vmatpush1.xpose.msra.mxu0 %v941
    %947 = vmatprep.subr.mxu0 0.0
    %948 = vmatpush1.xpose.msra.mxu0 %v943
    %949 = vmatprep.subr.mxu0 0.0
    %950 = vmatpush1.xpose.msra.mxu0 0.0
    %951 = vmatprep.subr.mxu0 0.0
    %952 = vmatpush1.xpose.msra.mxu0 0.0
    %953 = vmatprep.subr.mxu0 0.0
    %954 = vmatpush1.xpose.msra.mxu0 0.0
    %955 = vmatprep.subr.mxu0 0.0
    %956 = vmatpush1.xpose.msra.mxu0 0.0
    %957 = vmatprep.subr.mxu0 0.0
    %958 = vmatpush1.xpose.msra.mxu0 0.0
    %959 = vmatprep.subr.mxu0 0.0
    %960 = vmatpush1.xpose.msra.mxu0 0.0
    %961 = vmatprep.subr.mxu0 0.0
    %962 = vmatpush1.xpose.msra.mxu0 0.0
    %963 = vmatprep.subr.mxu0 0.0
    %964 = vmatpush1.xpose.msra.mxu0 0.0
    %965 = vmatprep.subr.mxu0 0.0
    %966 = vmatpush1.xpose.msra.mxu0 0.0
    %967 = vmatprep.subr.mxu0 0.0
    %968 = vmatpush1.xpose.msra.mxu0 0.0
    %969 = vmatprep.subr.mxu0 0.0
    %970 = vmatpush1.xpose.msra.mxu0 0.0
    %971 = vmatprep.subr.mxu0 0.0
    %972 = vmatpush1.xpose.msra.mxu0 0.0
    %973 = vmatprep.subr.mxu0 0.0
    %974 = vmatpush1.xpose.msra.mxu0 0.0
    %975 = vmatprep.subr.mxu0 0.0
    %976 = vmatpush1.xpose.msra.mxu0 0.0
    %977 = vmatprep.subr.mxu0 0.0
    %978 = vmatpush1.xpose.msra.mxu0 0.0
    %979 = vmatprep.subr.mxu0 0.0
    %980 = vmatpush1.xpose.msra.mxu0 0.0
    %981 = vmatprep.subr.mxu0 0.0
    %982 = vmatpush1.xpose.msra.mxu0 0.0
    %983 = vmatprep.subr.mxu0 0.0
    %984 = vmatpush1.xpose.msra.mxu0 0.0
    %985 = vmatprep.subr.mxu0 0.0
    %986 = vmatpush1.xpose.msra.mxu0 0.0
    %987 = vmatprep.subr.mxu0 0.0
    %988 = vmatpush1.xpose.msra.mxu0 0.0
    %989 = vmatprep.subr.mxu0 0.0
    %990 = vmatpush1.xpose.msra.mxu0 0.0
    %991 = vmatprep.subr.mxu0 0.0
    %992 = vmatpush1.xpose.msra.mxu0 0.0
    %993 = vmatprep.subr.mxu0 0.0
    %994 = vmatpush1.xpose.msra.mxu0 0.0
    %995 = vmatprep.subr.mxu0 0.0
    %996 = vmatpush1.xpose.msra.mxu0 0.0
    %997 = vmatprep.subr.mxu0 0.0
    %998 = vmatpush1.xpose.msra.mxu0 0.0
    %999 = vmatprep.subr.mxu0 0.0
    %1000 = vmatpush1.xpose.msra.mxu0 0.0
    %1001 = vmatprep.subr.mxu0 0.0
    %1002 = vmatpush1.xpose.msra.mxu0 0.0
    %1003 = vmatprep.subr.mxu0 0.0
    %1004 = vmatpush1.xpose.msra.mxu0 0.0
    %1005 = vmatprep.subr.mxu0 0.0
    %1006 = vmatpush1.xpose.msra.mxu0 0.0
    %1007 = vmatprep.subr.mxu0 0.0
    %1008 = vmatpush1.xpose.msra.mxu0 0.0
    %1009 = vmatprep.mubr.f32.mxu0 0.0
    %1010 = vmatmul.mubr.f32.gmra.mrb[0].mxu0 %v937
    %v1011 = vpop.f32.mrb[0].mxu0
    %v1012 = vadd.f32 0.0, %v1011
    %v1013 = vpop.f32.mrb[0].mxu0
    %1014 = vmatprep.mubr.f32.mxu0 0.0
    %1015 = vmatmul.mubr.f32.gmra.mrb[0].mxu0 %v939
    %v1016 = vpop.f32.mrb[0].mxu0
    %v1017 = vadd.f32 0.0, %v1016
    %v1018 = vpop.f32.mrb[0].mxu0
    %1019 = vdwg.mxu0
    %v1020 = vmul.f32 %v1012, 0.25
    %v1021 = vmul.f32 %v1017, 0.25
    %v1022 = vadd.f32 %v1020, %v82
    %v1023 = vadd.f32 %v1021, %v83
    %v1024 = vsel %vm732, %v1022, -inf
    %1025 = vmax.xlane.f32.xlu0 %v1024
    %v1026 = vpop.xlane.xlu0 %1025
    %v1027 = vsel %vm732, %v1023, -inf
    %1028 = vmax.xlane.f32.xlu0 %v1027
    %v1029 = vpop.xlane.xlu0 %1028
    %v1030 = vsub.f32 %v1022, %v1026
    %v1031 = vsub.f32 %v1023, %v1029
    %v1032 = vmul.f32 %v1030, 1.442695
    %v1033 = vpow.pop %v1032
    %v1034 = vmul.f32 %v1031, 1.442695
    %v1035 = vpow.pop %v1034
    %v1036 = vsel %vm732, %v1033, 0.0
    %1037 = vadd.xlane.f32.xlu0 %v1036
    %v1038 = vpop.xlane.xlu0 %1037
    %v1039 = vsel %vm732, %v1035, 0.0
    %1040 = vadd.xlane.f32.xlu0 %v1039
    %v1041 = vpop.xlane.xlu0 %1040
    %v1042 = vrcp.pop %v1038
    %v1043 = vrcp.pop %v1041
    %v1044 = vmul.f32 %v1033, %v1042
    %v1045 = vmul.f32 %v1035, %v1043
    %1046 = vrot.lane.b32.xlu0 %v718, 48
    %v1047 = vpop.permute.xlu0 %1046
    %1048 = vrot.lane.b32.xlu0 %v723, 48
    %v1049 = vpop.permute.xlu0 %1048
    %v1053 = vsel %vm732, %v1044, 0
    %v1056 = vsel %vm732, %v1045, 0
    %1058 = vmatprep.subr.mxu0 0.0
    %1059 = vmatpush1.msra.mxu0 %v1047
    %1060 = vmatprep.subr.mxu0 0.0
    %1061 = vmatpush1.msra.mxu0 %v1049
    %1062 = vmatprep.subr.mxu0 0.0
    %1063 = vmatpush1.msra.mxu0 0.0
    %1064 = vmatprep.subr.mxu0 0.0
    %1065 = vmatpush1.msra.mxu0 0.0
    %1066 = vmatprep.subr.mxu0 0.0
    %1067 = vmatpush1.msra.mxu0 0.0
    %1068 = vmatprep.subr.mxu0 0.0
    %1069 = vmatpush1.msra.mxu0 0.0
    %1070 = vmatprep.subr.mxu0 0.0
    %1071 = vmatpush1.msra.mxu0 0.0
    %1072 = vmatprep.subr.mxu0 0.0
    %1073 = vmatpush1.msra.mxu0 0.0
    %1074 = vmatprep.subr.mxu0 0.0
    %1075 = vmatpush1.msra.mxu0 0.0
    %1076 = vmatprep.subr.mxu0 0.0
    %1077 = vmatpush1.msra.mxu0 0.0
    %1078 = vmatprep.subr.mxu0 0.0
    %1079 = vmatpush1.msra.mxu0 0.0
    %1080 = vmatprep.subr.mxu0 0.0
    %1081 = vmatpush1.msra.mxu0 0.0
    %1082 = vmatprep.subr.mxu0 0.0
    %1083 = vmatpush1.msra.mxu0 0.0
    %1084 = vmatprep.subr.mxu0 0.0
    %1085 = vmatpush1.msra.mxu0 0.0
    %1086 = vmatprep.subr.mxu0 0.0
    %1087 = vmatpush1.msra.mxu0 0.0
    %1088 = vmatprep.subr.mxu0 0.0
    %1089 = vmatpush1.msra.mxu0 0.0
    %1090 = vmatprep.subr.mxu0 0.0
    %1091 = vmatpush1.msra.mxu0 0.0
    %1092 = vmatprep.subr.mxu0 0.0
    %1093 = vmatpush1.msra.mxu0 0.0
    %1094 = vmatprep.subr.mxu0 0.0
    %1095 = vmatpush1.msra.mxu0 0.0
    %1096 = vmatprep.subr.mxu0 0.0
    %1097 = vmatpush1.msra.mxu0 0.0
    %1098 = vmatprep.subr.mxu0 0.0
    %1099 = vmatpush1.msra.mxu0 0.0
    %1100 = vmatprep.subr.mxu0 0.0
    %1101 = vmatpush1.msra.mxu0 0.0
    %1102 = vmatprep.subr.mxu0 0.0
    %1103 = vmatpush1.msra.mxu0 0.0
    %1104 = vmatprep.subr.mxu0 0.0
    %1105 = vmatpush1.msra.mxu0 0.0
    %1106 = vmatprep.subr.mxu0 0.0
    %1107 = vmatpush1.msra.mxu0 0.0
    %1108 = vmatprep.subr.mxu0 0.0
    %1109 = vmatpush1.msra.mxu0 0.0
    %1110 = vmatprep.subr.mxu0 0.0
    %1111 = vmatpush1.msra.mxu0 0.0
    %1112 = vmatprep.subr.mxu0 0.0
    %1113 = vmatpush1.msra.mxu0 0.0
    %1114 = vmatprep.subr.mxu0 0.0
    %1115 = vmatpush1.msra.mxu0 0.0
    %1116 = vmatprep.subr.mxu0 0.0
    %1117 = vmatpush1.msra.mxu0 0.0
    %1118 = vmatprep.subr.mxu0 0.0
    %1119 = vmatpush1.msra.mxu0 0.0
    %1120 = vmatprep.subr.mxu0 0.0
    %1121 = vmatpush1.msra.mxu0 0.0
    %1122 = vmatprep.mubr.f32.mxu0 0.0
    %1123 = vmatmul.mubr.f32.gmra.mrb[0].mxu0 %v1053
    %v1124 = vpop.f32.mrb[0].mxu0
    %v1125 = vadd.f32 0.0, %v1124
    %v1126 = vpop.f32.mrb[0].mxu0
    %1127 = vmatprep.mubr.f32.mxu0 0.0
    %1128 = vmatmul.mubr.f32.gmra.mrb[0].mxu0 %v1056
    %v1129 = vpop.f32.mrb[0].mxu0
    %v1130 = vadd.f32 0.0, %v1129
    %v1131 = vpop.f32.mrb[0].mxu0
    %1132 = vdwg.mxu0
    %1135 = vrot.lane.b32.xlu0 %v1125, 16
    %v1136 = vpop.permute.xlu0 %1135
    %1137 = vrot.lane.b32.xlu0 %v1130, 16
    %v1138 = vpop.permute.xlu0 %1137
    %v1141 = vsel %vm732, %v921, %v1136
    %v1142 = vsel %vm732, %v926, %v1138
    %v1143 = vld [vmem:[%s4] sm:$0xff]
    %v1144 = vld [vmem:[%s4 + $0x8] sm:$0xff]
    %v1145 = vld [vmem:[%s4 + $0x10] sm:$0xff]
    %v1146 = vld [vmem:[%s4 + $0x18] sm:$0xff]
    %v1147 = vlaneseq
    %v1148 = vshrl.u32 %v1147, 7
    %v1149 = vsub.s32 0, %v1148
    %v1150 = vrot.slane %v639, %v1149
    %v1152 = vsel %vm644, %v1141, 0
    %v1155 = vsel %vm644, %v1142, 0
    %1157 = vmatprep.subr.mxu0 0.0
    %1158 = vmatpush1.msra.mxu0 %v1143
    %1159 = vmatprep.subr.mxu0 0.0
    %1160 = vmatpush1.msra.mxu0 %v1144
    %1161 = vmatprep.subr.mxu0 0.0
    %1162 = vmatpush1.msra.mxu0 %v1145
    %1163 = vmatprep.subr.mxu0 0.0
    %1164 = vmatpush1.msra.mxu0 %v1146
    %1165 = vmatprep.subr.mxu0 0.0
    %1166 = vmatpush1.msra.mxu0 0.0
    %1167 = vmatprep.subr.mxu0 0.0
    %1168 = vmatpush1.msra.mxu0 0.0
    %1169 = vmatprep.subr.mxu0 0.0
    %1170 = vmatpush1.msra.mxu0 0.0
    %1171 = vmatprep.subr.mxu0 0.0
    %1172 = vmatpush1.msra.mxu0 0.0
    %1173 = vmatprep.subr.mxu0 0.0
    %1174 = vmatpush1.msra.mxu0 0.0
    %1175 = vmatprep.subr.mxu0 0.0
    %1176 = vmatpush1.msra.mxu0 0.0
    %1177 = vmatprep.subr.mxu0 0.0
    %1178 = vmatpush1.msra.mxu0 0.0
    %1179 = vmatprep.subr.mxu0 0.0
    %1180 = vmatpush1.msra.mxu0 0.0
    %1181 = vmatprep.subr.mxu0 0.0
    %1182 = vmatpush1.msra.mxu0 0.0
    %1183 = vmatprep.subr.mxu0 0.0
    %1184 = vmatpush1.msra.mxu0 0.0
    %1185 = vmatprep.subr.mxu0 0.0
    %1186 = vmatpush1.msra.mxu0 0.0
    %1187 = vmatprep.subr.mxu0 0.0
    %1188 = vmatpush1.msra.mxu0 0.0
    %1189 = vmatprep.subr.mxu0 0.0
    %1190 = vmatpush1.msra.mxu0 0.0
    %1191 = vmatprep.subr.mxu0 0.0
    %1192 = vmatpush1.msra.mxu0 0.0
    %1193 = vmatprep.subr.mxu0 0.0
    %1194 = vmatpush1.msra.mxu0 0.0
    %1195 = vmatprep.subr.mxu0 0.0
    %1196 = vmatpush1.msra.mxu0 0.0
    %1197 = vmatprep.subr.mxu0 0.0
    %1198 = vmatpush1.msra.mxu0 0.0
    %1199 = vmatprep.subr.mxu0 0.0
    %1200 = vmatpush1.msra.mxu0 0.0
    %1201 = vmatprep.subr.mxu0 0.0
    %1202 = vmatpush1.msra.mxu0 0.0
    %1203 = vmatprep.subr.mxu0 0.0
    %1204 = vmatpush1.msra.mxu0 0.0
    %1205 = vmatprep.subr.mxu0 0.0
    %1206 = vmatpush1.msra.mxu0 0.0
    %1207 = vmatprep.subr.mxu0 0.0
    %1208 = vmatpush1.msra.mxu0 0.0
    %1209 = vmatprep.subr.mxu0 0.0
    %1210 = vmatpush1.msra.mxu0 0.0
    %1211 = vmatprep.subr.mxu0 0.0
    %1212 = vmatpush1.msra.mxu0 0.0
    %1213 = vmatprep.subr.mxu0 0.0
    %1214 = vmatpush1.msra.mxu0 0.0
    %1215 = vmatprep.subr.mxu0 0.0
    %1216 = vmatpush1.msra.mxu0 0.0
    %1217 = vmatprep.subr.mxu0 0.0
    %1218 = vmatpush1.msra.mxu0 0.0
    %1219 = vmatprep.subr.mxu0 0.0
    %1220 = vmatpush1.msra.mxu0 0.0
    %1221 = vmatprep.mubr.f32.mxu0 0.0
    %1222 = vmatmul.mubr.f32.gmra.mrb[0].mxu0 %v1152
    %v1223 = vpop.f32.mrb[0].mxu0
    %v1224 = vadd.f32 %v1150, %v1223
    %v1225 = vpop.f32.mrb[0].mxu0
    %1226 = vmatprep.mubr.f32.mxu0 0.0
    %1227 = vmatmul.mubr.f32.gmra.mrb[0].mxu0 %v1155
    %v1228 = vpop.f32.mrb[0].mxu0
    %v1229 = vadd.f32 %v1150, %v1228
    %v1230 = vpop.f32.mrb[0].mxu0
    %1231 = vdwg.mxu0
    %v1232 = vadd.f32 %v1224, %v637
    %v1233 = vadd.f32 %v1229, %v638
    %v1234 = vsel %vm644, %v1232, 0.0
    %1235 = vadd.xlane.f32.xlu0 %v1234
    %v1236 = vpop.xlane.xlu0 %1235
    %v1237 = vsel %vm644, %v1233, 0.0
    %1238 = vadd.xlane.f32.xlu0 %v1237
    %v1239 = vpop.xlane.xlu0 %1238
    %v1240 = vrcp.pop 32.0
    %v1241 = vmul.f32 %v1236, %v1240
    %v1242 = vmul.f32 %v1239, %v1240
    %v1243 = vmul.f32 %v1232, %v1232
    %v1244 = vmul.f32 %v1233, %v1233
    %v1245 = vsel %vm644, %v1243, 0.0
    %1246 = vadd.xlane.f32.xlu0 %v1245
    %v1247 = vpop.xlane.xlu0 %1246
    %v1248 = vsel %vm644, %v1244, 0.0
    %1249 = vadd.xlane.f32.xlu0 %v1248
    %v1250 = vpop.xlane.xlu0 %1249
    %v1251 = vmul.f32 %v1247, %v1240
    %v1252 = vmul.f32 %v1250, %v1240
    %v1253 = vmul.f32 %v1241, %v1241
    %v1254 = vmul.f32 %v1242, %v1242
    %v1255 = vsub.f32 %v1251, %v1253
    %v1256 = vsub.f32 %v1252, %v1254
    %v1257 = vadd.f32 %v1255, 1e-06
    %v1258 = vadd.f32 %v1256, 1e-06
    %v1259 = vrsqrt.pop %v1257
    %v1260 = vrsqrt.pop %v1258
    %v1261 = vlaneseq
    %v1262 = vshrl.u32 %v1261, 7
    %v1263 = vsub.s32 1, %v1262
    %v1264 = vrot.slane %v639, %v1263
    %v1265 = vmul.f32 %v1259, %v1264
    %v1266 = vmul.f32 %v1260, %v1264
    %v1267 = vsub.f32 %v1232, %v1241
    %v1268 = vsub.f32 %v1233, %v1242
    %v1269 = vmul.f32 %v1267, %v1265
    %v1270 = vmul.f32 %v1268, %v1266
    %v1271 = vlaneseq
    %v1272 = vshrl.u32 %v1271, 7
    %v1273 = vsub.s32 2, %v1272
    %v1274 = vrot.slane %v639, %v1273
    %v1275 = vadd.f32 %v1269, %v1274
    %v1276 = vadd.f32 %v1270, %v1274
    %v1277 = vmul.f32 %v1275, %v628
    %v1278 = vmul.f32 %v1276, %v633
    %v1279 = vld [vmem:[%s5] sm:$0xff]
    %v1280 = vld [vmem:[%s5 + $0x8] sm:$0xff]
    %v1281 = vld [vmem:[%s5 + $0x10] sm:$0xff]
    %v1282 = vld [vmem:[%s5 + $0x18] sm:$0xff]
    %v1283 = vlaneseq
    %v1284 = vshrl.u32 %v1283, 7
    %v1285 = vsub.s32 3, %v1284
    %v1286 = vrot.slane %v639, %v1285
    %v1288 = vsel %vm644, %v1277, 0
    %v1291 = vsel %vm644, %v1278, 0
    %1293 = vmatprep.subr.mxu0 0.0
    %1294 = vmatpush1.msra.mxu0 %v1279
    %1295 = vmatprep.subr.mxu0 0.0
    %1296 = vmatpush1.msra.mxu0 %v1280
    %1297 = vmatprep.subr.mxu0 0.0
    %1298 = vmatpush1.msra.mxu0 %v1281
    %1299 = vmatprep.subr.mxu0 0.0
    %1300 = vmatpush1.msra.mxu0 %v1282
    %1301 = vmatprep.subr.mxu0 0.0
    %1302 = vmatpush1.msra.mxu0 0.0
    %1303 = vmatprep.subr.mxu0 0.0
    %1304 = vmatpush1.msra.mxu0 0.0
    %1305 = vmatprep.subr.mxu0 0.0
    %1306 = vmatpush1.msra.mxu0 0.0
    %1307 = vmatprep.subr.mxu0 0.0
    %1308 = vmatpush1.msra.mxu0 0.0
    %1309 = vmatprep.subr.mxu0 0.0
    %1310 = vmatpush1.msra.mxu0 0.0
    %1311 = vmatprep.subr.mxu0 0.0
    %1312 = vmatpush1.msra.mxu0 0.0
    %1313 = vmatprep.subr.mxu0 0.0
    %1314 = vmatpush1.msra.mxu0 0.0
    %1315 = vmatprep.subr.mxu0 0.0
    %1316 = vmatpush1.msra.mxu0 0.0
    %1317 = vmatprep.subr.mxu0 0.0
    %1318 = vmatpush1.msra.mxu0 0.0
    %1319 = vmatprep.subr.mxu0 0.0
    %1320 = vmatpush1.msra.mxu0 0.0
    %1321 = vmatprep.subr.mxu0 0.0
    %1322 = vmatpush1.msra.mxu0 0.0
    %1323 = vmatprep.subr.mxu0 0.0
    %1324 = vmatpush1.msra.mxu0 0.0
    %1325 = vmatprep.subr.mxu0 0.0
    %1326 = vmatpush1.msra.mxu0 0.0
    %1327 = vmatprep.subr.mxu0 0.0
    %1328 = vmatpush1.msra.mxu0 0.0
    %1329 = vmatprep.subr.mxu0 0.0
    %1330 = vmatpush1.msra.mxu0 0.0
    %1331 = vmatprep.subr.mxu0 0.0
    %1332 = vmatpush1.msra.mxu0 0.0
    %1333 = vmatprep.subr.mxu0 0.0
    %1334 = vmatpush1.msra.mxu0 0.0
    %1335 = vmatprep.subr.mxu0 0.0
    %1336 = vmatpush1.msra.mxu0 0.0
    %1337 = vmatprep.subr.mxu0 0.0
    %1338 = vmatpush1.msra.mxu0 0.0
    %1339 = vmatprep.subr.mxu0 0.0
    %1340 = vmatpush1.msra.mxu0 0.0
    %1341 = vmatprep.subr.mxu0 0.0
    %1342 = vmatpush1.msra.mxu0 0.0
    %1343 = vmatprep.subr.mxu0 0.0
    %1344 = vmatpush1.msra.mxu0 0.0
    %1345 = vmatprep.subr.mxu0 0.0
    %1346 = vmatpush1.msra.mxu0 0.0
    %1347 = vmatprep.subr.mxu0 0.0
    %1348 = vmatpush1.msra.mxu0 0.0
    %1349 = vmatprep.subr.mxu0 0.0
    %1350 = vmatpush1.msra.mxu0 0.0
    %1351 = vmatprep.subr.mxu0 0.0
    %1352 = vmatpush1.msra.mxu0 0.0
    %1353 = vmatprep.subr.mxu0 0.0
    %1354 = vmatpush1.msra.mxu0 0.0
    %1355 = vmatprep.subr.mxu0 0.0
    %1356 = vmatpush1.msra.mxu0 0.0
    %1357 = vmatprep.mubr.f32.mxu0 0.0
    %1358 = vmatmul.mubr.f32.gmra.mrb[0].mxu0 %v1288
    %v1359 = vpop.f32.mrb[0].mxu0
    %v1360 = vadd.f32 %v1286, %v1359
    %v1361 = vpop.f32.mrb[0].mxu0
    %1362 = vmatprep.mubr.f32.mxu0 0.0
    %1363 = vmatmul.mubr.f32.gmra.mrb[0].mxu0 %v1291
    %v1364 = vpop.f32.mrb[0].mxu0
    %v1365 = vadd.f32 %v1286, %v1364
    %v1366 = vpop.f32.mrb[0].mxu0
    %1367 = vdwg.mxu0
    %v1368 = vmul.f32 %v1360, %v1360
    %v1369 = vmul.f32 %v1365, %v1365
    %v1370 = vmul.f32 %v1360, %v1368
    %v1371 = vmul.f32 %v1365, %v1369
    %v1372 = vmul.f32 %v1370, 0.044715
    %v1373 = vmul.f32 %v1371, 0.044715
    %v1374 = vadd.f32 %v1360, %v1372
    %v1375 = vadd.f32 %v1365, %v1373
    %v1376 = vmul.f32 %v1374, 0.7978846
    %v1377 = vmul.f32 %v1375, 0.7978846
    %v1378 = vtanh.pop %v1376
    %v1379 = vtanh.pop %v1377
    %v1380 = vadd.f32 %v1378, 1.0
    %v1381 = vadd.f32 %v1379, 1.0
    %v1382 = vmul.f32 %v1380, 0.5
    %v1383 = vmul.f32 %v1381, 0.5
    %v1384 = vmul.f32 %v1360, %v1382
    %v1385 = vmul.f32 %v1365, %v1383
    %v1386 = vld [vmem:[%s6] sm:$0xff]
    %v1387 = vld [vmem:[%s6 + $0x8] sm:$0xff]
    %v1388 = vld [vmem:[%s6 + $0x10] sm:$0xff]
    %v1389 = vld [vmem:[%s6 + $0x18] sm:$0xff]
    %v1390 = vld [vmem:[%s6 + $0x20] sm:$0xff]
    %v1391 = vld [vmem:[%s6 + $0x28] sm:$0xff]
    %v1392 = vld [vmem:[%s6 + $0x30] sm:$0xff]
    %v1393 = vld [vmem:[%s6 + $0x38] sm:$0xff]
    %v1394 = vlaneseq
    %v1395 = vshrl.u32 %v1394, 7
    %v1396 = vsub.s32 4, %v1395
    %v1397 = vrot.slane %v639, %v1396
    %vm1398 = vcmask 523264
    %v1400 = vsel %vm1398, %v1384, 0
    %v1403 = vsel %vm1398, %v1385, 0
    %1405 = vmatprep.subr.mxu0 0.0
    %1406 = vmatpush1.msra.mxu0 %v1386
    %1407 = vmatprep.subr.mxu0 0.0
    %1408 = vmatpush1.msra.mxu0 %v1387
    %1409 = vmatprep.subr.mxu0 0.0
    %1410 = vmatpush1.msra.mxu0 %v1388
    %1411 = vmatprep.subr.mxu0 0.0
    %1412 = vmatpush1.msra.mxu0 %v1389
    %1413 = vmatprep.subr.mxu0 0.0
    %1414 = vmatpush1.msra.mxu0 %v1390
    %1415 = vmatprep.subr.mxu0 0.0
    %1416 = vmatpush1.msra.mxu0 %v1391
    %1417 = vmatprep.subr.mxu0 0.0
    %1418 = vmatpush1.msra.mxu0 %v1392
    %1419 = vmatprep.subr.mxu0 0.0
    %1420 = vmatpush1.msra.mxu0 %v1393
    %1421 = vmatprep.subr.mxu0 0.0
    %1422 = vmatpush1.msra.mxu0 0.0
    %1423 = vmatprep.subr.mxu0 0.0
    %1424 = vmatpush1.msra.mxu0 0.0
    %1425 = vmatprep.subr.mxu0 0.0
    %1426 = vmatpush1.msra.mxu0 0.0
    %1427 = vmatprep.subr.mxu0 0.0
    %1428 = vmatpush1.msra.mxu0 0.0
    %1429 = vmatprep.subr.mxu0 0.0
    %1430 = vmatpush1.msra.mxu0 0.0
    %1431 = vmatprep.subr.mxu0 0.0
    %1432 = vmatpush1.msra.mxu0 0.0
    %1433 = vmatprep.subr.mxu0 0.0
    %1434 = vmatpush1.msra.mxu0 0.0
    %1435 = vmatprep.subr.mxu0 0.0
    %1436 = vmatpush1.msra.mxu0 0.0
    %1437 = vmatprep.subr.mxu0 0.0
    %1438 = vmatpush1.msra.mxu0 0.0
    %1439 = vmatprep.subr.mxu0 0.0
    %1440 = vmatpush1.msra.mxu0 0.0
    %1441 = vmatprep.subr.mxu0 0.0
    %1442 = vmatpush1.msra.mxu0 0.0
    %1443 = vmatprep.subr.mxu0 0.0
    %1444 = vmatpush1.msra.mxu0 0.0
    %1445 = vmatprep.subr.mxu0 0.0
    %1446 = vmatpush1.msra.mxu0 0.0
    %1447 = vmatprep.subr.mxu0 0.0
    %1448 = vmatpush1.msra.mxu0 0.0
    %1449 = vmatprep.subr.mxu0 0.0
    %1450 = vmatpush1.msra.mxu0 0.0
    %1451 = vmatprep.subr.mxu0 0.0
    %1452 = vmatpush1.msra.mxu0 0.0
    %1453 = vmatprep.subr.mxu0 0.0
    %1454 = vmatpush1.msra.mxu0 0.0
    %1455 = vmatprep.subr.mxu0 0.0
    %1456 = vmatpush1.msra.mxu0 0.0
    %1457 = vmatprep.subr.mxu0 0.0
    %1458 = vmatpush1.msra.mxu0 0.0
    %1459 = vmatprep.subr.mxu0 0.0
    %1460 = vmatpush1.msra.mxu0 0.0
    %1461 = vmatprep.subr.mxu0 0.0
    %1462 = vmatpush1.msra.mxu0 0.0
    %1463 = vmatprep.subr.mxu0 0.0
    %1464 = vmatpush1.msra.mxu0 0.0
    %1465 = vmatprep.subr.mxu0 0.0
    %1466 = vmatpush1.msra.mxu0 0.0
    %1467 = vmatprep.subr.mxu0 0.0
    %1468 = vmatpush1.msra.mxu0 0.0
    %1469 = vmatprep.mubr.f32.mxu0 0.0
    %1470 = vmatmul.mubr.f32.gmra.mrb[0].mxu0 %v1400
    %v1471 = vpop.f32.mrb[0].mxu0
    %v1472 = vadd.f32 %v1397, %v1471
    %v1473 = vpop.f32.mrb[0].mxu0
    %1474 = vmatprep.mubr.f32.mxu0 0.0
    %1475 = vmatmul.mubr.f32.gmra.mrb[0].mxu0 %v1403
    %v1476 = vpop.f32.mrb[0].mxu0
    %v1477 = vadd.f32 %v1397, %v1476
    %v1478 = vpop.f32.mrb[0].mxu0
    %1479 = vdwg.mxu0
    %v1480 = vadd.f32 %v1472, %v1277
    %v1481 = vadd.f32 %v1477, %v1278
    %v1482 = vsel %vm644, %v1480, 0.0
    %1483 = vadd.xlane.f32.xlu0 %v1482
    %v1484 = vpop.xlane.xlu0 %1483
    %v1485 = vsel %vm644, %v1481, 0.0
    %1486 = vadd.xlane.f32.xlu0 %v1485
    %v1487 = vpop.xlane.xlu0 %1486
    %v1488 = vmul.f32 %v1484, %v1240
    %v1489 = vmul.f32 %v1487, %v1240
    %v1490 = vmul.f32 %v1480, %v1480
    %v1491 = vmul.f32 %v1481, %v1481
    %v1492 = vsel %vm644, %v1490, 0.0
    %1493 = vadd.xlane.f32.xlu0 %v1492
    %v1494 = vpop.xlane.xlu0 %1493
    %v1495 = vsel %vm644, %v1491, 0.0
    %1496 = vadd.xlane.f32.xlu0 %v1495
    %v1497 = vpop.xlane.xlu0 %1496
    %v1498 = vmul.f32 %v1494, %v1240
    %v1499 = vmul.f32 %v1497, %v1240
    %v1500 = vmul.f32 %v1488, %v1488
    %v1501 = vmul.f32 %v1489, %v1489
    %v1502 = vsub.f32 %v1498, %v1500
    %v1503 = vsub.f32 %v1499, %v1501
    %v1504 = vadd.f32 %v1502, 1e-06
    %v1505 = vadd.f32 %v1503, 1e-06
    %v1506 = vrsqrt.pop %v1504
    %v1507 = vrsqrt.pop %v1505
    %v1508 = vlaneseq
    %v1509 = vshrl.u32 %v1508, 7
    %v1510 = vsub.s32 5, %v1509
    %v1511 = vrot.slane %v639, %v1510
    %v1512 = vmul.f32 %v1506, %v1511
    %v1513 = vmul.f32 %v1507, %v1511
    %v1514 = vsub.f32 %v1480, %v1488
    %v1515 = vsub.f32 %v1481, %v1489
    %v1516 = vmul.f32 %v1514, %v1512
    %v1517 = vmul.f32 %v1515, %v1513
    %v1518 = vlaneseq
    %v1519 = vshrl.u32 %v1518, 7
    %v1520 = vsub.s32 6, %v1519
    %v1521 = vrot.slane %v639, %v1520
    %v1522 = vadd.f32 %v1516, %v1521
    %v1523 = vadd.f32 %v1517, %v1521
    %v1524 = vmul.f32 %v1522, %v628
    %v1525 = vmul.f32 %v1523, %v633
    %s1526 = scalar_lea.vmem %s7, 8
    %v1527 = vld [vmem:[%s1526] sm:$0xff]
    %s1528 = scalar_lea.vmem %s3, 32
    %v1529 = vld [vmem:[%s1528] sm:$0xff]
    %v1530 = vld [vmem:[%s1528 + $0x8] sm:$0xff]
    %v1531 = vld [vmem:[%s1528 + $0x10] sm:$0xff]
    %v1532 = vld [vmem:[%s1528 + $0x18] sm:$0xff]
    %v1534 = vsel %vm644, %v1524, 0
    %v1537 = vsel %vm644, %v1525, 0
    %1539 = vmatprep.subr.mxu0 0.0
    %1540 = vmatpush1.msra.mxu0 %v1529
    %1541 = vmatprep.subr.mxu0 0.0
    %1542 = vmatpush1.msra.mxu0 %v1530
    %1543 = vmatprep.subr.mxu0 0.0
    %1544 = vmatpush1.msra.mxu0 %v1531
    %1545 = vmatprep.subr.mxu0 0.0
    %1546 = vmatpush1.msra.mxu0 %v1532
    %1547 = vmatprep.subr.mxu0 0.0
    %1548 = vmatpush1.msra.mxu0 0.0
    %1549 = vmatprep.subr.mxu0 0.0
    %1550 = vmatpush1.msra.mxu0 0.0
    %1551 = vmatprep.subr.mxu0 0.0
    %1552 = vmatpush1.msra.mxu0 0.0
    %1553 = vmatprep.subr.mxu0 0.0
    %1554 = vmatpush1.msra.mxu0 0.0
    %1555 = vmatprep.subr.mxu0 0.0
    %1556 = vmatpush1.msra.mxu0 0.0
    %1557 = vmatprep.subr.mxu0 0.0
    %1558 = vmatpush1.msra.mxu0 0.0
    %1559 = vmatprep.subr.mxu0 0.0
    %1560 = vmatpush1.msra.mxu0 0.0
    %1561 = vmatprep.subr.mxu0 0.0
    %1562 = vmatpush1.msra.mxu0 0.0
    %1563 = vmatprep.subr.mxu0 0.0
    %1564 = vmatpush1.msra.mxu0 0.0
    %1565 = vmatprep.subr.mxu0 0.0
    %1566 = vmatpush1.msra.mxu0 0.0
    %1567 = vmatprep.subr.mxu0 0.0
    %1568 = vmatpush1.msra.mxu0 0.0
    %1569 = vmatprep.subr.mxu0 0.0
    %1570 = vmatpush1.msra.mxu0 0.0
    %1571 = vmatprep.subr.mxu0 0.0
    %1572 = vmatpush1.msra.mxu0 0.0
    %1573 = vmatprep.subr.mxu0 0.0
    %1574 = vmatpush1.msra.mxu0 0.0
    %1575 = vmatprep.subr.mxu0 0.0
    %1576 = vmatpush1.msra.mxu0 0.0
    %1577 = vmatprep.subr.mxu0 0.0
    %1578 = vmatpush1.msra.mxu0 0.0
    %1579 = vmatprep.subr.mxu0 0.0
    %1580 = vmatpush1.msra.mxu0 0.0
    %1581 = vmatprep.subr.mxu0 0.0
    %1582 = vmatpush1.msra.mxu0 0.0
    %1583 = vmatprep.subr.mxu0 0.0
    %1584 = vmatpush1.msra.mxu0 0.0
    %1585 = vmatprep.subr.mxu0 0.0
    %1586 = vmatpush1.msra.mxu0 0.0
    %1587 = vmatprep.subr.mxu0 0.0
    %1588 = vmatpush1.msra.mxu0 0.0
    %1589 = vmatprep.subr.mxu0 0.0
    %1590 = vmatpush1.msra.mxu0 0.0
    %1591 = vmatprep.subr.mxu0 0.0
    %1592 = vmatpush1.msra.mxu0 0.0
    %1593 = vmatprep.subr.mxu0 0.0
    %1594 = vmatpush1.msra.mxu0 0.0
    %1595 = vmatprep.subr.mxu0 0.0
    %1596 = vmatpush1.msra.mxu0 0.0
    %1597 = vmatprep.subr.mxu0 0.0
    %1598 = vmatpush1.msra.mxu0 0.0
    %1599 = vmatprep.subr.mxu0 0.0
    %1600 = vmatpush1.msra.mxu0 0.0
    %1601 = vmatprep.subr.mxu0 0.0
    %1602 = vmatpush1.msra.mxu0 0.0
    %1603 = vmatprep.mubr.f32.mxu0 0.0
    %1604 = vmatmul.mubr.f32.gmra.mrb[0].mxu0 %v1534
    %v1605 = vpop.f32.mrb[0].mxu0
    %v1606 = vadd.f32 0.0, %v1605
    %v1607 = vpop.f32.mrb[0].mxu0
    %1608 = vmatprep.mubr.f32.mxu0 0.0
    %1609 = vmatmul.mubr.f32.gmra.mrb[0].mxu0 %v1537
    %v1610 = vpop.f32.mrb[0].mxu0
    %v1611 = vadd.f32 0.0, %v1610
    %v1612 = vpop.f32.mrb[0].mxu0
    %1613 = vdwg.mxu0
    %1616 = vrot.lane.b32.xlu0 %v1606, 96
    %v1617 = vpop.permute.xlu0 %1616
    %1618 = vrot.lane.b32.xlu0 %v1611, 96
    %v1619 = vpop.permute.xlu0 %1618
    %v1620 = vsel %vm732, %v1606, 0
    %v1622 = vsel %vm732, %v1611, 0
    %v1624 = vsel %vm732, %v1617, 0
    %v1626 = vsel %vm732, %v1619, 0
    %1628 = vmatprep.subr.mxu0 0.0
    %1629 = vmatpush1.xpose.msra.mxu0 %v1624
    %1630 = vmatprep.subr.mxu0 0.0
    %1631 = vmatpush1.xpose.msra.mxu0 %v1626
    %1632 = vmatprep.subr.mxu0 0.0
    %1633 = vmatpush1.xpose.msra.mxu0 0.0
    %1634 = vmatprep.subr.mxu0 0.0
    %1635 = vmatpush1.xpose.msra.mxu0 0.0
    %1636 = vmatprep.subr.mxu0 0.0
    %1637 = vmatpush1.xpose.msra.mxu0 0.0
    %1638 = vmatprep.subr.mxu0 0.0
    %1639 = vmatpush1.xpose.msra.mxu0 0.0
    %1640 = vmatprep.subr.mxu0 0.0
    %1641 = vmatpush1.xpose.msra.mxu0 0.0
    %1642 = vmatprep.subr.mxu0 0.0
    %1643 = vmatpush1.xpose.msra.mxu0 0.0
    %1644 = vmatprep.subr.mxu0 0.0
    %1645 = vmatpush1.xpose.msra.mxu0 0.0
    %1646 = vmatprep.subr.mxu0 0.0
    %1647 = vmatpush1.xpose.msra.mxu0 0.0
    %1648 = vmatprep.subr.mxu0 0.0
    %1649 = vmatpush1.xpose.msra.mxu0 0.0
    %1650 = vmatprep.subr.mxu0 0.0
    %1651 = vmatpush1.xpose.msra.mxu0 0.0
    %1652 = vmatprep.subr.mxu0 0.0
    %1653 = vmatpush1.xpose.msra.mxu0 0.0
    %1654 = vmatprep.subr.mxu0 0.0
    %1655 = vmatpush1.xpose.msra.mxu0 0.0
    %1656 = vmatprep.subr.mxu0 0.0
    %1657 = vmatpush1.xpose.msra.mxu0 0.0
    %1658 = vmatprep.subr.mxu0 0.0
    %1659 = vmatpush1.xpose.msra.mxu0 0.0
    %1660 = vmatprep.subr.mxu0 0.0
    %1661 = vmatpush1.xpose.msra.mxu0 0.0
    %1662 = vmatprep.subr.mxu0 0.0
    %1663 = vmatpush1.xpose.msra.mxu0 0.0
    %1664 = vmatprep.subr.mxu0 0.0
    %1665 = vmatpush1.xpose.msra.mxu0 0.0
    %1666 = vmatprep.subr.mxu0 0.0
    %1667 = vmatpush1.xpose.msra.mxu0 0.0
    %1668 = vmatprep.subr.mxu0 0.0
    %1669 = vmatpush1.xpose.msra.mxu0 0.0
    %1670 = vmatprep.subr.mxu0 0.0
    %1671 = vmatpush1.xpose.msra.mxu0 0.0
    %1672 = vmatprep.subr.mxu0 0.0
    %1673 = vmatpush1.xpose.msra.mxu0 0.0
    %1674 = vmatprep.subr.mxu0 0.0
    %1675 = vmatpush1.xpose.msra.mxu0 0.0
    %1676 = vmatprep.subr.mxu0 0.0
    %1677 = vmatpush1.xpose.msra.mxu0 0.0
    %1678 = vmatprep.subr.mxu0 0.0
    %1679 = vmatpush1.xpose.msra.mxu0 0.0
    %1680 = vmatprep.subr.mxu0 0.0
    %1681 = vmatpush1.xpose.msra.mxu0 0.0
    %1682 = vmatprep.subr.mxu0 0.0
    %1683 = vmatpush1.xpose.msra.mxu0 0.0
    %1684 = vmatprep.subr.mxu0 0.0
    %1685 = vmatpush1.xpose.msra.mxu0 0.0
    %1686 = vmatprep.subr.mxu0 0.0
    %1687 = vmatpush1.xpose.msra.mxu0 0.0
    %1688 = vmatprep.subr.mxu0 0.0
    %1689 = vmatpush1.xpose.msra.mxu0 0.0
    %1690 = vmatprep.subr.mxu0 0.0
    %1691 = vmatpush1.xpose.msra.mxu0 0.0
    %1692 = vmatprep.mubr.f32.mxu0 0.0
    %1693 = vmatmul.mubr.f32.gmra.mrb[0].mxu0 %v1620
    %v1694 = vpop.f32.mrb[0].mxu0
    %v1695 = vadd.f32 0.0, %v1694
    %v1696 = vpop.f32.mrb[0].mxu0
    %1697 = vmatprep.mubr.f32.mxu0 0.0
    %1698 = vmatmul.mubr.f32.gmra.mrb[0].mxu0 %v1622
    %v1699 = vpop.f32.mrb[0].mxu0
    %v1700 = vadd.f32 0.0, %v1699
    %v1701 = vpop.f32.mrb[0].mxu0
    %1702 = vdwg.mxu0
    %v1703 = vmul.f32 %v1695, 0.25
    %v1704 = vmul.f32 %v1700, 0.25
    %v1705 = vadd.f32 %v1703, %v82
    %v1706 = vadd.f32 %v1704, %v83
    %v1707 = vsel %vm732, %v1705, -inf
    %1708 = vmax.xlane.f32.xlu0 %v1707
    %v1709 = vpop.xlane.xlu0 %1708
    %v1710 = vsel %vm732, %v1706, -inf
    %1711 = vmax.xlane.f32.xlu0 %v1710
    %v1712 = vpop.xlane.xlu0 %1711
    %v1713 = vsub.f32 %v1705, %v1709
    %v1714 = vsub.f32 %v1706, %v1712
    %v1715 = vmul.f32 %v1713, 1.442695
    %v1716 = vpow.pop %v1715
    %v1717 = vmul.f32 %v1714, 1.442695
    %v1718 = vpow.pop %v1717
    %v1719 = vsel %vm732, %v1716, 0.0
    %1720 = vadd.xlane.f32.xlu0 %v1719
    %v1721 = vpop.xlane.xlu0 %1720
    %v1722 = vsel %vm732, %v1718, 0.0
    %1723 = vadd.xlane.f32.xlu0 %v1722
    %v1724 = vpop.xlane.xlu0 %1723
    %v1725 = vrcp.pop %v1721
    %v1726 = vrcp.pop %v1724
    %v1727 = vmul.f32 %v1716, %v1725
    %v1728 = vmul.f32 %v1718, %v1726
    %1729 = vrot.lane.b32.xlu0 %v1606, 64
    %v1730 = vpop.permute.xlu0 %1729
    %1731 = vrot.lane.b32.xlu0 %v1611, 64
    %v1732 = vpop.permute.xlu0 %1731
    %v1736 = vsel %vm732, %v1727, 0
    %v1739 = vsel %vm732, %v1728, 0
    %1741 = vmatprep.subr.mxu0 0.0
    %1742 = vmatpush1.msra.mxu0 %v1730
    %1743 = vmatprep.subr.mxu0 0.0
    %1744 = vmatpush1.msra.mxu0 %v1732
    %1745 = vmatprep.subr.mxu0 0.0
    %1746 = vmatpush1.msra.mxu0 0.0
    %1747 = vmatprep.subr.mxu0 0.0
    %1748 = vmatpush1.msra.mxu0 0.0
    %1749 = vmatprep.subr.mxu0 0.0
    %1750 = vmatpush1.msra.mxu0 0.0
    %1751 = vmatprep.subr.mxu0 0.0
    %1752 = vmatpush1.msra.mxu0 0.0
    %1753 = vmatprep.subr.mxu0 0.0
    %1754 = vmatpush1.msra.mxu0 0.0
    %1755 = vmatprep.subr.mxu0 0.0
    %1756 = vmatpush1.msra.mxu0 0.0
    %1757 = vmatprep.subr.mxu0 0.0
    %1758 = vmatpush1.msra.mxu0 0.0
    %1759 = vmatprep.subr.mxu0 0.0
    %1760 = vmatpush1.msra.mxu0 0.0
    %1761 = vmatprep.subr.mxu0 0.0
    %1762 = vmatpush1.msra.mxu0 0.0
    %1763 = vmatprep.subr.mxu0 0.0
    %1764 = vmatpush1.msra.mxu0 0.0
    %1765 = vmatprep.subr.mxu0 0.0
    %1766 = vmatpush1.msra.mxu0 0.0
    %1767 = vmatprep.subr.mxu0 0.0
    %1768 = vmatpush1.msra.mxu0 0.0
    %1769 = vmatprep.subr.mxu0 0.0
    %1770 = vmatpush1.msra.mxu0 0.0
    %1771 = vmatprep.subr.mxu0 0.0
    %1772 = vmatpush1.msra.mxu0 0.0
    %1773 = vmatprep.subr.mxu0 0.0
    %1774 = vmatpush1.msra.mxu0 0.0
    %1775 = vmatprep.subr.mxu0 0.0
    %1776 = vmatpush1.msra.mxu0 0.0
    %1777 = vmatprep.subr.mxu0 0.0
    %1778 = vmatpush1.msra.mxu0 0.0
    %1779 = vmatprep.subr.mxu0 0.0
    %1780 = vmatpush1.msra.mxu0 0.0
    %1781 = vmatprep.subr.mxu0 0.0
    %1782 = vmatpush1.msra.mxu0 0.0
    %1783 = vmatprep.subr.mxu0 0.0
    %1784 = vmatpush1.msra.mxu0 0.0
    %1785 = vmatprep.subr.mxu0 0.0
    %1786 = vmatpush1.msra.mxu0 0.0
    %1787 = vmatprep.subr.mxu0 0.0
    %1788 = vmatpush1.msra.mxu0 0.0
    %1789 = vmatprep.subr.mxu0 0.0
    %1790 = vmatpush1.msra.mxu0 0.0
    %1791 = vmatprep.subr.mxu0 0.0
    %1792 = vmatpush1.msra.mxu0 0.0
    %1793 = vmatprep.subr.mxu0 0.0
    %1794 = vmatpush1.msra.mxu0 0.0
    %1795 = vmatprep.subr.mxu0 0.0
    %1796 = vmatpush1.msra.mxu0 0.0
    %1797 = vmatprep.subr.mxu0 0.0
    %1798 = vmatpush1.msra.mxu0 0.0
    %1799 = vmatprep.subr.mxu0 0.0
    %1800 = vmatpush1.msra.mxu0 0.0
    %1801 = vmatprep.subr.mxu0 0.0
    %1802 = vmatpush1.msra.mxu0 0.0
    %1803 = vmatprep.subr.mxu0 0.0
    %1804 = vmatpush1.msra.mxu0 0.0
    %1805 = vmatprep.mubr.f32.mxu0 0.0
    %1806 = vmatmul.mubr.f32.gmra.mrb[0].mxu0 %v1736
    %v1807 = vpop.f32.mrb[0].mxu0
    %v1808 = vadd.f32 0.0, %v1807
    %v1809 = vpop.f32.mrb[0].mxu0
    %1810 = vmatprep.mubr.f32.mxu0 0.0
    %1811 = vmatmul.mubr.f32.gmra.mrb[0].mxu0 %v1739
    %v1812 = vpop.f32.mrb[0].mxu0
    %v1813 = vadd.f32 0.0, %v1812
    %v1814 = vpop.f32.mrb[0].mxu0
    %1815 = vdwg.mxu0
    %1816 = vrot.lane.b32.xlu0 %v1606, 112
    %v1817 = vpop.permute.xlu0 %1816
    %1818 = vrot.lane.b32.xlu0 %v1611, 112
    %v1819 = vpop.permute.xlu0 %1818
    %1820 = vrot.lane.b32.xlu0 %v1606, 80
    %v1821 = vpop.permute.xlu0 %1820
    %1822 = vrot.lane.b32.xlu0 %v1611, 80
    %v1823 = vpop.permute.xlu0 %1822
    %v1824 = vsel %vm732, %v1817, 0
    %v1826 = vsel %vm732, %v1819, 0
    %v1828 = vsel %vm732, %v1821, 0
    %v1830 = vsel %vm732, %v1823, 0
    %1832 = vmatprep.subr.mxu0 0.0
    %1833 = vmatpush1.xpose.msra.mxu0 %v1828
    %1834 = vmatprep.subr.mxu0 0.0
    %1835 = vmatpush1.xpose.msra.mxu0 %v1830
    %1836 = vmatprep.subr.mxu0 0.0
    %1837 = vmatpush1.xpose.msra.mxu0 0.0
    %1838 = vmatprep.subr.mxu0 0.0
    %1839 = vmatpush1.xpose.msra.mxu0 0.0
    %1840 = vmatprep.subr.mxu0 0.0
    %1841 = vmatpush1.xpose.msra.mxu0 0.0
    %1842 = vmatprep.subr.mxu0 0.0
    %1843 = vmatpush1.xpose.msra.mxu0 0.0
    %1844 = vmatprep.subr.mxu0 0.0
    %1845 = vmatpush1.xpose.msra.mxu0 0.0
    %1846 = vmatprep.subr.mxu0 0.0
    %1847 = vmatpush1.xpose.msra.mxu0 0.0
    %1848 = vmatprep.subr.mxu0 0.0
    %1849 = vmatpush1.xpose.msra.mxu0 0.0
    %1850 = vmatprep.subr.mxu0 0.0
    %1851 = vmatpush1.xpose.msra.mxu0 0.0
    %1852 = vmatprep.subr.mxu0 0.0
    %1853 = vmatpush1.xpose.msra.mxu0 0.0
    %1854 = vmatprep.subr.mxu0 0.0
    %1855 = vmatpush1.xpose.msra.mxu0 0.0
    %1856 = vmatprep.subr.mxu0 0.0
    %1857 = vmatpush1.xpose.msra.mxu0 0.0
    %1858 = vmatprep.subr.mxu0 0.0
    %1859 = vmatpush1.xpose.msra.mxu0 0.0
    %1860 = vmatprep.subr.mxu0 0.0
    %1861 = vmatpush1.xpose.msra.mxu0 0.0
    %1862 = vmatprep.subr.mxu0 0.0
    %1863 = vmatpush1.xpose.msra.mxu0 0.0
    %1864 = vmatprep.subr.mxu0 0.0
    %1865 = vmatpush1.xpose.msra.mxu0 0.0
    %1866 = vmatprep.subr.mxu0 0.0
    %1867 = vmatpush1.xpose.msra.mxu0 0.0
    %1868 = vmatprep.subr.mxu0 0.0
    %1869 = vmatpush1.xpose.msra.mxu0 0.0
    %1870 = vmatprep.subr.mxu0 0.0
    %1871 = vmatpush1.xpose.msra.mxu0 0.0
    %1872 = vmatprep.subr.mxu0 0.0
    %1873 = vmatpush1.xpose.msra.mxu0 0.0
    %1874 = vmatprep.subr.mxu0 0.0
    %1875 = vmatpush1.xpose.msra.mxu0 0.0
    %1876 = vmatprep.subr.mxu0 0.0
    %1877 = vmatpush1.xpose.msra.mxu0 0.0
    %1878 = vmatprep.subr.mxu0 0.0
    %1879 = vmatpush1.xpose.msra.mxu0 0.0
    %1880 = vmatprep.subr.mxu0 0.0
    %1881 = vmatpush1.xpose.msra.mxu0 0.0
    %1882 = vmatprep.subr.mxu0 0.0
    %1883 = vmatpush1.xpose.msra.mxu0 0.0
    %1884 = vmatprep.subr.mxu0 0.0
    %1885 = vmatpush1.xpose.msra.mxu0 0.0
    %1886 = vmatprep.subr.mxu0 0.0
    %1887 = vmatpush1.xpose.msra.mxu0 0.0
    %1888 = vmatprep.subr.mxu0 0.0
    %1889 = vmatpush1.xpose.msra.mxu0 0.0
    %1890 = vmatprep.subr.mxu0 0.0
    %1891 = vmatpush1.xpose.msra.mxu0 0.0
    %1892 = vmatprep.subr.mxu0 0.0
    %1893 = vmatpush1.xpose.msra.mxu0 0.0
    %1894 = vmatprep.subr.mxu0 0.0
    %1895 = vmatpush1.xpose.msra.mxu0 0.0
    %1896 = vmatprep.mubr.f32.mxu0 0.0
    %1897 = vmatmul.mubr.f32.gmra.mrb[0].mxu0 %v1824
    %v1898 = vpop.f32.mrb[0].mxu0
    %v1899 = vadd.f32 0.0, %v1898
    %v1900 = vpop.f32.mrb[0].mxu0
    %1901 = vmatprep.mubr.f32.mxu0 0.0
    %1902 = vmatmul.mubr.f32.gmra.mrb[0].mxu0 %v1826
    %v1903 = vpop.f32.mrb[0].mxu0
    %v1904 = vadd.f32 0.0, %v1903
    %v1905 = vpop.f32.mrb[0].mxu0
    %1906 = vdwg.mxu0
    %v1907 = vmul.f32 %v1899, 0.25
    %v1908 = vmul.f32 %v1904, 0.25
    %v1909 = vadd.f32 %v1907, %v82
    %v1910 = vadd.f32 %v1908, %v83
    %v1911 = vsel %vm732, %v1909, -inf
    %1912 = vmax.xlane.f32.xlu0 %v1911
    %v1913 = vpop.xlane.xlu0 %1912
    %v1914 = vsel %vm732, %v1910, -inf
    %1915 = vmax.xlane.f32.xlu0 %v1914
    %v1916 = vpop.xlane.xlu0 %1915
    %v1917 = vsub.f32 %v1909, %v1913
    %v1918 = vsub.f32 %v1910, %v1916
    %v1919 = vmul.f32 %v1917, 1.442695
    %v1920 = vpow.pop %v1919
    %v1921 = vmul.f32 %v1918, 1.442695
    %v1922 = vpow.pop %v1921
    %v1923 = vsel %vm732, %v1920, 0.0
    %1924 = vadd.xlane.f32.xlu0 %v1923
    %v1925 = vpop.xlane.xlu0 %1924
    %v1926 = vsel %vm732, %v1922, 0.0
    %1927 = vadd.xlane.f32.xlu0 %v1926
    %v1928 = vpop.xlane.xlu0 %1927
    %v1929 = vrcp.pop %v1925
    %v1930 = vrcp.pop %v1928
    %v1931 = vmul.f32 %v1920, %v1929
    %v1932 = vmul.f32 %v1922, %v1930
    %1933 = vrot.lane.b32.xlu0 %v1606, 48
    %v1934 = vpop.permute.xlu0 %1933
    %1935 = vrot.lane.b32.xlu0 %v1611, 48
    %v1936 = vpop.permute.xlu0 %1935
    %v1940 = vsel %vm732, %v1931, 0
    %v1943 = vsel %vm732, %v1932, 0
    %1945 = vmatprep.subr.mxu0 0.0
    %1946 = vmatpush1.msra.mxu0 %v1934
    %1947 = vmatprep.subr.mxu0 0.0
    %1948 = vmatpush1.msra.mxu0 %v1936
    %1949 = vmatprep.subr.mxu0 0.0
    %1950 = vmatpush1.msra.mxu0 0.0
    %1951 = vmatprep.subr.mxu0 0.0
    %1952 = vmatpush1.msra.mxu0 0.0
    %1953 = vmatprep.subr.mxu0 0.0
    %1954 = vmatpush1.msra.mxu0 0.0
    %1955 = vmatprep.subr.mxu0 0.0
    %1956 = vmatpush1.msra.mxu0 0.0
    %1957 = vmatprep.subr.mxu0 0.0
    %1958 = vmatpush1.msra.mxu0 0.0
    %1959 = vmatprep.subr.mxu0 0.0
    %1960 = vmatpush1.msra.mxu0 0.0
    %1961 = vmatprep.subr.mxu0 0.0
    %1962 = vmatpush1.msra.mxu0 0.0
    %1963 = vmatprep.subr.mxu0 0.0
    %1964 = vmatpush1.msra.mxu0 0.0
    %1965 = vmatprep.subr.mxu0 0.0
    %1966 = vmatpush1.msra.mxu0 0.0
    %1967 = vmatprep.subr.mxu0 0.0
    %1968 = vmatpush1.msra.mxu0 0.0
    %1969 = vmatprep.subr.mxu0 0.0
    %1970 = vmatpush1.msra.mxu0 0.0
    %1971 = vmatprep.subr.mxu0 0.0
    %1972 = vmatpush1.msra.mxu0 0.0
    %1973 = vmatprep.subr.mxu0 0.0
    %1974 = vmatpush1.msra.mxu0 0.0
    %1975 = vmatprep.subr.mxu0 0.0
    %1976 = vmatpush1.msra.mxu0 0.0
    %1977 = vmatprep.subr.mxu0 0.0
    %1978 = vmatpush1.msra.mxu0 0.0
    %1979 = vmatprep.subr.mxu0 0.0
    %1980 = vmatpush1.msra.mxu0 0.0
    %1981 = vmatprep.subr.mxu0 0.0
    %1982 = vmatpush1.msra.mxu0 0.0
    %1983 = vmatprep.subr.mxu0 0.0
    %1984 = vmatpush1.msra.mxu0 0.0
    %1985 = vmatprep.subr.mxu0 0.0
    %1986 = vmatpush1.msra.mxu0 0.0
    %1987 = vmatprep.subr.mxu0 0.0
    %1988 = vmatpush1.msra.mxu0 0.0
    %1989 = vmatprep.subr.mxu0 0.0
    %1990 = vmatpush1.msra.mxu0 0.0
    %1991 = vmatprep.subr.mxu0 0.0
    %1992 = vmatpush1.msra.mxu0 0.0
    %1993 = vmatprep.subr.mxu0 0.0
    %1994 = vmatpush1.msra.mxu0 0.0
    %1995 = vmatprep.subr.mxu0 0.0
    %1996 = vmatpush1.msra.mxu0 0.0
    %1997 = vmatprep.subr.mxu0 0.0
    %1998 = vmatpush1.msra.mxu0 0.0
    %1999 = vmatprep.subr.mxu0 0.0
    %2000 = vmatpush1.msra.mxu0 0.0
    %2001 = vmatprep.subr.mxu0 0.0
    %2002 = vmatpush1.msra.mxu0 0.0
    %2003 = vmatprep.subr.mxu0 0.0
    %2004 = vmatpush1.msra.mxu0 0.0
    %2005 = vmatprep.subr.mxu0 0.0
    %2006 = vmatpush1.msra.mxu0 0.0
    %2007 = vmatprep.subr.mxu0 0.0
    %2008 = vmatpush1.msra.mxu0 0.0
    %2009 = vmatprep.mubr.f32.mxu0 0.0
    %2010 = vmatmul.mubr.f32.gmra.mrb[0].mxu0 %v1940
    %v2011 = vpop.f32.mrb[0].mxu0
    %v2012 = vadd.f32 0.0, %v2011
    %v2013 = vpop.f32.mrb[0].mxu0
    %2014 = vmatprep.mubr.f32.mxu0 0.0
    %2015 = vmatmul.mubr.f32.gmra.mrb[0].mxu0 %v1943
    %v2016 = vpop.f32.mrb[0].mxu0
    %v2017 = vadd.f32 0.0, %v2016
    %v2018 = vpop.f32.mrb[0].mxu0
    %2019 = vdwg.mxu0
    %2022 = vrot.lane.b32.xlu0 %v2012, 16
    %v2023 = vpop.permute.xlu0 %2022
    %2024 = vrot.lane.b32.xlu0 %v2017, 16
    %v2025 = vpop.permute.xlu0 %2024
    %v2028 = vsel %vm732, %v1808, %v2023
    %v2029 = vsel %vm732, %v1813, %v2025
    %s2030 = scalar_lea.vmem %s4, 32
    %v2031 = vld [vmem:[%s2030] sm:$0xff]
    %v2032 = vld [vmem:[%s2030 + $0x8] sm:$0xff]
    %v2033 = vld [vmem:[%s2030 + $0x10] sm:$0xff]
    %v2034 = vld [vmem:[%s2030 + $0x18] sm:$0xff]
    %v2035 = vlaneseq
    %v2036 = vshrl.u32 %v2035, 7
    %v2037 = vsub.s32 0, %v2036
    %v2038 = vrot.slane %v1527, %v2037
    %v2040 = vsel %vm644, %v2028, 0
    %v2043 = vsel %vm644, %v2029, 0
    %2045 = vmatprep.subr.mxu0 0.0
    %2046 = vmatpush1.msra.mxu0 %v2031
    %2047 = vmatprep.subr.mxu0 0.0
    %2048 = vmatpush1.msra.mxu0 %v2032
    %2049 = vmatprep.subr.mxu0 0.0
    %2050 = vmatpush1.msra.mxu0 %v2033
    %2051 = vmatprep.subr.mxu0 0.0
    %2052 = vmatpush1.msra.mxu0 %v2034
    %2053 = vmatprep.subr.mxu0 0.0
    %2054 = vmatpush1.msra.mxu0 0.0
    %2055 = vmatprep.subr.mxu0 0.0
    %2056 = vmatpush1.msra.mxu0 0.0
    %2057 = vmatprep.subr.mxu0 0.0
    %2058 = vmatpush1.msra.mxu0 0.0
    %2059 = vmatprep.subr.mxu0 0.0
    %2060 = vmatpush1.msra.mxu0 0.0
    %2061 = vmatprep.subr.mxu0 0.0
    %2062 = vmatpush1.msra.mxu0 0.0
    %2063 = vmatprep.subr.mxu0 0.0
    %2064 = vmatpush1.msra.mxu0 0.0
    %2065 = vmatprep.subr.mxu0 0.0
    %2066 = vmatpush1.msra.mxu0 0.0
    %2067 = vmatprep.subr.mxu0 0.0
    %2068 = vmatpush1.msra.mxu0 0.0
    %2069 = vmatprep.subr.mxu0 0.0
    %2070 = vmatpush1.msra.mxu0 0.0
    %2071 = vmatprep.subr.mxu0 0.0
    %2072 = vmatpush1.msra.mxu0 0.0
    %2073 = vmatprep.subr.mxu0 0.0
    %2074 = vmatpush1.msra.mxu0 0.0
    %2075 = vmatprep.subr.mxu0 0.0
    %2076 = vmatpush1.msra.mxu0 0.0
    %2077 = vmatprep.subr.mxu0 0.0
    %2078 = vmatpush1.msra.mxu0 0.0
    %2079 = vmatprep.subr.mxu0 0.0
    %2080 = vmatpush1.msra.mxu0 0.0
    %2081 = vmatprep.subr.mxu0 0.0
    %2082 = vmatpush1.msra.mxu0 0.0
    %2083 = vmatprep.subr.mxu0 0.0
    %2084 = vmatpush1.msra.mxu0 0.0
    %2085 = vmatprep.subr.mxu0 0.0
    %2086 = vmatpush1.msra.mxu0 0.0
    %2087 = vmatprep.subr.mxu0 0.0
    %2088 = vmatpush1.msra.mxu0 0.0
    %2089 = vmatprep.subr.mxu0 0.0
    %2090 = vmatpush1.msra.mxu0 0.0
    %2091 = vmatprep.subr.mxu0 0.0
    %2092 = vmatpush1.msra.mxu0 0.0
    %2093 = vmatprep.subr.mxu0 0.0
    %2094 = vmatpush1.msra.mxu0 0.0
    %2095 = vmatprep.subr.mxu0 0.0
    %2096 = vmatpush1.msra.mxu0 0.0
    %2097 = vmatprep.subr.mxu0 0.0
    %2098 = vmatpush1.msra.mxu0 0.0
    %2099 = vmatprep.subr.mxu0 0.0
    %2100 = vmatpush1.msra.mxu0 0.0
    %2101 = vmatprep.subr.mxu0 0.0
    %2102 = vmatpush1.msra.mxu0 0.0
    %2103 = vmatprep.subr.mxu0 0.0
    %2104 = vmatpush1.msra.mxu0 0.0
    %2105 = vmatprep.subr.mxu0 0.0
    %2106 = vmatpush1.msra.mxu0 0.0
    %2107 = vmatprep.subr.mxu0 0.0
    %2108 = vmatpush1.msra.mxu0 0.0
    %2109 = vmatprep.mubr.f32.mxu0 0.0
    %2110 = vmatmul.mubr.f32.gmra.mrb[0].mxu0 %v2040
    %v2111 = vpop.f32.mrb[0].mxu0
    %v2112 = vadd.f32 %v2038, %v2111
    %v2113 = vpop.f32.mrb[0].mxu0
    %2114 = vmatprep.mubr.f32.mxu0 0.0
    %2115 = vmatmul.mubr.f32.gmra.mrb[0].mxu0 %v2043
    %v2116 = vpop.f32.mrb[0].mxu0
    %v2117 = vadd.f32 %v2038, %v2116
    %v2118 = vpop.f32.mrb[0].mxu0
    %2119 = vdwg.mxu0
    %v2120 = vadd.f32 %v2112, %v1524
    %v2121 = vadd.f32 %v2117, %v1525
    %v2122 = vsel %vm644, %v2120, 0.0
    %2123 = vadd.xlane.f32.xlu0 %v2122
    %v2124 = vpop.xlane.xlu0 %2123
    %v2125 = vsel %vm644, %v2121, 0.0
    %2126 = vadd.xlane.f32.xlu0 %v2125
    %v2127 = vpop.xlane.xlu0 %2126
    %v2128 = vmul.f32 %v2124, %v1240
    %v2129 = vmul.f32 %v2127, %v1240
    %v2130 = vmul.f32 %v2120, %v2120
    %v2131 = vmul.f32 %v2121, %v2121
    %v2132 = vsel %vm644, %v2130, 0.0
    %2133 = vadd.xlane.f32.xlu0 %v2132
    %v2134 = vpop.xlane.xlu0 %2133
    %v2135 = vsel %vm644, %v2131, 0.0
    %2136 = vadd.xlane.f32.xlu0 %v2135
    %v2137 = vpop.xlane.xlu0 %2136
    %v2138 = vmul.f32 %v2134, %v1240
    %v2139 = vmul.f32 %v2137, %v1240
    %v2140 = vmul.f32 %v2128, %v2128
    %v2141 = vmul.f32 %v2129, %v2129
    %v2142 = vsub.f32 %v2138, %v2140
    %v2143 = vsub.f32 %v2139, %v2141
    %v2144 = vadd.f32 %v2142, 1e-06
    %v2145 = vadd.f32 %v2143, 1e-06
    %v2146 = vrsqrt.pop %v2144
    %v2147 = vrsqrt.pop %v2145
    %v2148 = vlaneseq
    %v2149 = vshrl.u32 %v2148, 7
    %v2150 = vsub.s32 1, %v2149
    %v2151 = vrot.slane %v1527, %v2150
    %v2152 = vmul.f32 %v2146, %v2151
    %v2153 = vmul.f32 %v2147, %v2151
    %v2154 = vsub.f32 %v2120, %v2128
    %v2155 = vsub.f32 %v2121, %v2129
    %v2156 = vmul.f32 %v2154, %v2152
    %v2157 = vmul.f32 %v2155, %v2153
    %v2158 = vlaneseq
    %v2159 = vshrl.u32 %v2158, 7
    %v2160 = vsub.s32 2, %v2159
    %v2161 = vrot.slane %v1527, %v2160
    %v2162 = vadd.f32 %v2156, %v2161
    %v2163 = vadd.f32 %v2157, %v2161
    %v2164 = vmul.f32 %v2162, %v628
    %v2165 = vmul.f32 %v2163, %v633
    %s2166 = scalar_lea.vmem %s5, 32
    %v2167 = vld [vmem:[%s2166] sm:$0xff]
    %v2168 = vld [vmem:[%s2166 + $0x8] sm:$0xff]
    %v2169 = vld [vmem:[%s2166 + $0x10] sm:$0xff]
    %v2170 = vld [vmem:[%s2166 + $0x18] sm:$0xff]
    %v2171 = vlaneseq
    %v2172 = vshrl.u32 %v2171, 7
    %v2173 = vsub.s32 3, %v2172
    %v2174 = vrot.slane %v1527, %v2173
    %v2176 = vsel %vm644, %v2164, 0
    %v2179 = vsel %vm644, %v2165, 0
    %2181 = vmatprep.subr.mxu0 0.0
    %2182 = vmatpush1.msra.mxu0 %v2167
    %2183 = vmatprep.subr.mxu0 0.0
    %2184 = vmatpush1.msra.mxu0 %v2168
    %2185 = vmatprep.subr.mxu0 0.0
    %2186 = vmatpush1.msra.mxu0 %v2169
    %2187 = vmatprep.subr.mxu0 0.0
    %2188 = vmatpush1.msra.mxu0 %v2170
    %2189 = vmatprep.subr.mxu0 0.0
    %2190 = vmatpush1.msra.mxu0 0.0
    %2191 = vmatprep.subr.mxu0 0.0
    %2192 = vmatpush1.msra.mxu0 0.0
    %2193 = vmatprep.subr.mxu0 0.0
    %2194 = vmatpush1.msra.mxu0 0.0
    %2195 = vmatprep.subr.mxu0 0.0
    %2196 = vmatpush1.msra.mxu0 0.0
    %2197 = vmatprep.subr.mxu0 0.0
    %2198 = vmatpush1.msra.mxu0 0.0
    %2199 = vmatprep.subr.mxu0 0.0
    %2200 = vmatpush1.msra.mxu0 0.0
    %2201 = vmatprep.subr.mxu0 0.0
    %2202 = vmatpush1.msra.mxu0 0.0
    %2203 = vmatprep.subr.mxu0 0.0
    %2204 = vmatpush1.msra.mxu0 0.0
    %2205 = vmatprep.subr.mxu0 0.0
    %2206 = vmatpush1.msra.mxu0 0.0
    %2207 = vmatprep.subr.mxu0 0.0
    %2208 = vmatpush1.msra.mxu0 0.0
    %2209 = vmatprep.subr.mxu0 0.0
    %2210 = vmatpush1.msra.mxu0 0.0
    %2211 = vmatprep.subr.mxu0 0.0
    %2212 = vmatpush1.msra.mxu0 0.0
    %2213 = vmatprep.subr.mxu0 0.0
    %2214 = vmatpush1.msra.mxu0 0.0
    %2215 = vmatprep.subr.mxu0 0.0
    %2216 = vmatpush1.msra.mxu0 0.0
    %2217 = vmatprep.subr.mxu0 0.0
    %2218 = vmatpush1.msra.mxu0 0.0
    %2219 = vmatprep.subr.mxu0 0.0
    %2220 = vmatpush1.msra.mxu0 0.0
    %2221 = vmatprep.subr.mxu0 0.0
    %2222 = vmatpush1.msra.mxu0 0.0
    %2223 = vmatprep.subr.mxu0 0.0
    %2224 = vmatpush1.msra.mxu0 0.0
    %2225 = vmatprep.subr.mxu0 0.0
    %2226 = vmatpush1.msra.mxu0 0.0
    %2227 = vmatprep.subr.mxu0 0.0
    %2228 = vmatpush1.msra.mxu0 0.0
    %2229 = vmatprep.subr.mxu0 0.0
    %2230 = vmatpush1.msra.mxu0 0.0
    %2231 = vmatprep.subr.mxu0 0.0
    %2232 = vmatpush1.msra.mxu0 0.0
    %2233 = vmatprep.subr.mxu0 0.0
    %2234 = vmatpush1.msra.mxu0 0.0
    %2235 = vmatprep.subr.mxu0 0.0
    %2236 = vmatpush1.msra.mxu0 0.0
    %2237 = vmatprep.subr.mxu0 0.0
    %2238 = vmatpush1.msra.mxu0 0.0
    %2239 = vmatprep.subr.mxu0 0.0
    %2240 = vmatpush1.msra.mxu0 0.0
    %2241 = vmatprep.subr.mxu0 0.0
    %2242 = vmatpush1.msra.mxu0 0.0
    %2243 = vmatprep.subr.mxu0 0.0
    %2244 = vmatpush1.msra.mxu0 0.0
    %2245 = vmatprep.mubr.f32.mxu0 0.0
    %2246 = vmatmul.mubr.f32.gmra.mrb[0].mxu0 %v2176
    %v2247 = vpop.f32.mrb[0].mxu0
    %v2248 = vadd.f32 %v2174, %v2247
    %v2249 = vpop.f32.mrb[0].mxu0
    %2250 = vmatprep.mubr.f32.mxu0 0.0
    %2251 = vmatmul.mubr.f32.gmra.mrb[0].mxu0 %v2179
    %v2252 = vpop.f32.mrb[0].mxu0
    %v2253 = vadd.f32 %v2174, %v2252
    %v2254 = vpop.f32.mrb[0].mxu0
    %2255 = vdwg.mxu0
    %v2256 = vmul.f32 %v2248, %v2248
    %v2257 = vmul.f32 %v2253, %v2253
    %v2258 = vmul.f32 %v2248, %v2256
    %v2259 = vmul.f32 %v2253, %v2257
    %v2260 = vmul.f32 %v2258, 0.044715
    %v2261 = vmul.f32 %v2259, 0.044715
    %v2262 = vadd.f32 %v2248, %v2260
    %v2263 = vadd.f32 %v2253, %v2261
    %v2264 = vmul.f32 %v2262, 0.7978846
    %v2265 = vmul.f32 %v2263, 0.7978846
    %v2266 = vtanh.pop %v2264
    %v2267 = vtanh.pop %v2265
    %v2268 = vadd.f32 %v2266, 1.0
    %v2269 = vadd.f32 %v2267, 1.0
    %v2270 = vmul.f32 %v2268, 0.5
    %v2271 = vmul.f32 %v2269, 0.5
    %v2272 = vmul.f32 %v2248, %v2270
    %v2273 = vmul.f32 %v2253, %v2271
    %s2274 = scalar_lea.vmem %s6, 64
    %v2275 = vld [vmem:[%s2274] sm:$0xff]
    %v2276 = vld [vmem:[%s2274 + $0x8] sm:$0xff]
    %v2277 = vld [vmem:[%s2274 + $0x10] sm:$0xff]
    %v2278 = vld [vmem:[%s2274 + $0x18] sm:$0xff]
    %v2279 = vld [vmem:[%s2274 + $0x20] sm:$0xff]
    %v2280 = vld [vmem:[%s2274 + $0x28] sm:$0xff]
    %v2281 = vld [vmem:[%s2274 + $0x30] sm:$0xff]
    %v2282 = vld [vmem:[%s2274 + $0x38] sm:$0xff]
    %v2283 = vlaneseq
    %v2284 = vshrl.u32 %v2283, 7
    %v2285 = vsub.s32 4, %v2284
    %v2286 = vrot.slane %v1527, %v2285
    %v2288 = vsel %vm1398, %v2272, 0
    %v2291 = vsel %vm1398, %v2273, 0
    %2293 = vmatprep.subr.mxu0 0.0
    %2294 = vmatpush1.msra.mxu0 %v2275
    %2295 = vmatprep.subr.mxu0 0.0
    %2296 = vmatpush1.msra.mxu0 %v2276
    %2297 = vmatprep.subr.mxu0 0.0
    %2298 = vmatpush1.msra.mxu0 %v2277
    %2299 = vmatprep.subr.mxu0 0.0
    %2300 = vmatpush1.msra.mxu0 %v2278
    %2301 = vmatprep.subr.mxu0 0.0
    %2302 = vmatpush1.msra.mxu0 %v2279
    %2303 = vmatprep.subr.mxu0 0.0
    %2304 = vmatpush1.msra.mxu0 %v2280
    %2305 = vmatprep.subr.mxu0 0.0
    %2306 = vmatpush1.msra.mxu0 %v2281
    %2307 = vmatprep.subr.mxu0 0.0
    %2308 = vmatpush1.msra.mxu0 %v2282
    %2309 = vmatprep.subr.mxu0 0.0
    %2310 = vmatpush1.msra.mxu0 0.0
    %2311 = vmatprep.subr.mxu0 0.0
    %2312 = vmatpush1.msra.mxu0 0.0
    %2313 = vmatprep.subr.mxu0 0.0
    %2314 = vmatpush1.msra.mxu0 0.0
    %2315 = vmatprep.subr.mxu0 0.0
    %2316 = vmatpush1.msra.mxu0 0.0
    %2317 = vmatprep.subr.mxu0 0.0
    %2318 = vmatpush1.msra.mxu0 0.0
    %2319 = vmatprep.subr.mxu0 0.0
    %2320 = vmatpush1.msra.mxu0 0.0
    %2321 = vmatprep.subr.mxu0 0.0
    %2322 = vmatpush1.msra.mxu0 0.0
    %2323 = vmatprep.subr.mxu0 0.0
    %2324 = vmatpush1.msra.mxu0 0.0
    %2325 = vmatprep.subr.mxu0 0.0
    %2326 = vmatpush1.msra.mxu0 0.0
    %2327 = vmatprep.subr.mxu0 0.0
    %2328 = vmatpush1.msra.mxu0 0.0
    %2329 = vmatprep.subr.mxu0 0.0
    %2330 = vmatpush1.msra.mxu0 0.0
    %2331 = vmatprep.subr.mxu0 0.0
    %2332 = vmatpush1.msra.mxu0 0.0
    %2333 = vmatprep.subr.mxu0 0.0
    %2334 = vmatpush1.msra.mxu0 0.0
    %2335 = vmatprep.subr.mxu0 0.0
    %2336 = vmatpush1.msra.mxu0 0.0
    %2337 = vmatprep.subr.mxu0 0.0
    %2338 = vmatpush1.msra.mxu0 0.0
    %2339 = vmatprep.subr.mxu0 0.0
    %2340 = vmatpush1.msra.mxu0 0.0
    %2341 = vmatprep.subr.mxu0 0.0
    %2342 = vmatpush1.msra.mxu0 0.0
    %2343 = vmatprep.subr.mxu0 0.0
    %2344 = vmatpush1.msra.mxu0 0.0
    %2345 = vmatprep.subr.mxu0 0.0
    %2346 = vmatpush1.msra.mxu0 0.0
    %2347 = vmatprep.subr.mxu0 0.0
    %2348 = vmatpush1.msra.mxu0 0.0
    %2349 = vmatprep.subr.mxu0 0.0
    %2350 = vmatpush1.msra.mxu0 0.0
    %2351 = vmatprep.subr.mxu0 0.0
    %2352 = vmatpush1.msra.mxu0 0.0
    %2353 = vmatprep.subr.mxu0 0.0
    %2354 = vmatpush1.msra.mxu0 0.0
    %2355 = vmatprep.subr.mxu0 0.0
    %2356 = vmatpush1.msra.mxu0 0.0
    %2357 = vmatprep.mubr.f32.mxu0 0.0
    %2358 = vmatmul.mubr.f32.gmra.mrb[0].mxu0 %v2288
    %v2359 = vpop.f32.mrb[0].mxu0
    %v2360 = vadd.f32 %v2286, %v2359
    %v2361 = vpop.f32.mrb[0].mxu0
    %2362 = vmatprep.mubr.f32.mxu0 0.0
    %2363 = vmatmul.mubr.f32.gmra.mrb[0].mxu0 %v2291
    %v2364 = vpop.f32.mrb[0].mxu0
    %v2365 = vadd.f32 %v2286, %v2364
    %v2366 = vpop.f32.mrb[0].mxu0
    %2367 = vdwg.mxu0
    %v2368 = vadd.f32 %v2360, %v2164
    %v2369 = vadd.f32 %v2365, %v2165
    %v2370 = vsel %vm644, %v2368, 0.0
    %2371 = vadd.xlane.f32.xlu0 %v2370
    %v2372 = vpop.xlane.xlu0 %2371
    %v2373 = vsel %vm644, %v2369, 0.0
    %2374 = vadd.xlane.f32.xlu0 %v2373
    %v2375 = vpop.xlane.xlu0 %2374
    %v2376 = vmul.f32 %v2372, %v1240
    %v2377 = vmul.f32 %v2375, %v1240
    %v2378 = vmul.f32 %v2368, %v2368
    %v2379 = vmul.f32 %v2369, %v2369
    %v2380 = vsel %vm644, %v2378, 0.0
    %2381 = vadd.xlane.f32.xlu0 %v2380
    %v2382 = vpop.xlane.xlu0 %2381
    %v2383 = vsel %vm644, %v2379, 0.0
    %2384 = vadd.xlane.f32.xlu0 %v2383
    %v2385 = vpop.xlane.xlu0 %2384
    %v2386 = vmul.f32 %v2382, %v1240
    %v2387 = vmul.f32 %v2385, %v1240
    %v2388 = vmul.f32 %v2376, %v2376
    %v2389 = vmul.f32 %v2377, %v2377
    %v2390 = vsub.f32 %v2386, %v2388
    %v2391 = vsub.f32 %v2387, %v2389
    %v2392 = vadd.f32 %v2390, 1e-06
    %v2393 = vadd.f32 %v2391, 1e-06
    %v2394 = vrsqrt.pop %v2392
    %v2395 = vrsqrt.pop %v2393
    %v2396 = vlaneseq
    %v2397 = vshrl.u32 %v2396, 7
    %v2398 = vsub.s32 5, %v2397
    %v2399 = vrot.slane %v1527, %v2398
    %v2400 = vmul.f32 %v2394, %v2399
    %v2401 = vmul.f32 %v2395, %v2399
    %v2402 = vsub.f32 %v2368, %v2376
    %v2403 = vsub.f32 %v2369, %v2377
    %v2404 = vmul.f32 %v2402, %v2400
    %v2405 = vmul.f32 %v2403, %v2401
    %v2406 = vlaneseq
    %v2407 = vshrl.u32 %v2406, 7
    %v2408 = vsub.s32 6, %v2407
    %v2409 = vrot.slane %v1527, %v2408
    %v2410 = vadd.f32 %v2404, %v2409
    %v2411 = vadd.f32 %v2405, %v2409
    %v2412 = vmul.f32 %v2410, %v628
    %v2413 = vmul.f32 %v2411, %v633
    %2414 = vst.msk [vmem:[#allocation2] sm:$0xff] %vm644, %v2412
    %2415 = vst.msk [vmem:[#allocation2 + $0x8] sm:$0xff] %vm644, %v2413
    // Predicated region
    $region34: #{teedam_forward.1} parent=1 // pred_check
      _
    $region35: #{teedam_forward.1} parent=1 // pred_check_branch
      %2417 = sbr.rel (0) target = $region37
    $region36: #{teedam_forward.1} parent=1 // pred_region
      %s2419 = ssub.s32 256, 256
      %2420 = vsyncadd [#allocation3], %s2419
      %s2421 = sshll.u32 [#allocation2], 4
      %s2422 = int_to_ptr.vmem [resolvable:$true] %s2421
      %2427 = dma.vmem_to_hbm [thread:$0]  %s2422, 256, %s8, [#allocation3], 128, 128, 8
    $region37: #{teedam_forward.1} parent=1 // pred_fallthru
      _
    // Predicated region
    $region38: #{teedam_forward.1} parent=1 // pred_check
      _
    $region39: #{teedam_forward.1} parent=1 // pred_check_branch
      %2429 = sbr.rel (0) target = $region41
    $region40: #{teedam_forward.1} parent=1 // pred_region
      %2430 = dma.done [#allocation3], 256
    $region41: #{teedam_forward.1} parent=1 // pred_fallthru
      _
    %2431 = vsyncpa [#allocation3], 1

</llo_original>
